<compile_context>
chip_gen: v6e
topology: v6e:2x2x1
jax: 0.10.0
libtpu: 0.0.40
codegen_flags: <defaults>
</compile_context>

<pallas_src>
import functools

import jax
import jax.numpy as jnp
from jax import lax
from jax.experimental import pallas as pl
from jax.experimental.pallas import tpu as pltpu


def _round_up(x, m):
    return (x + m - 1) // m * m


def _vmem_capacity_bytes():
    try:
        info = pltpu.get_tpu_info()
        return int(getattr(info, "vmem_capacity_bytes", 64 * 1024 * 1024))
    except Exception:
        return 64 * 1024 * 1024          # conservative (v7x-sized) default


def _pick_oh_tile(OH, OW, target_rows):
    """Smallest divisor d of OH whose M tile (d*OW rows) is lane-aligned
    (d*OW % 128 == 0) and reaches `target_rows`; else the largest aligned
    divisor; else the whole image."""
    best = None
    for d in range(1, OH + 1):
        if OH % d:
            continue
        if (d * OW) % 128 != 0:
            continue
        best = d
        if d * OW >= target_rows:
            return d
    return best if best is not None else OH


# ---------------------------------------------------------------------------
# Kernel 1: fused im2col conv GEMM + BatchNorm partial-statistics epilogue.
# Grid: (N, OH_tiles, Cout_tiles), all "parallel".
# ---------------------------------------------------------------------------
def _conv_bnstats_body(x_ref, halo_ref, w_ref, conv_ref, stats_ref, *,
                       KH, KW, stride, TOH, OW, Cin, merge_taps):
    # x_ref:     (1, TOH*stride, Wp, Cin)   bf16  main input rows of this tile
    # halo_ref:  (1, KH-stride, Wp, Cin)    bf16  bottom halo rows (or None)
    # w_ref:     (KH*KW*Cin, TCO)           bf16  im2col-ordered weights
    # conv_ref:  (1, TOH*OW, TCO)           bf16  conv rows of this tile
    # stats_ref: (1, 1, 2, TCO)             f32   per-tile [sum, ssd] per channel
    rows = x_ref[0]
    if halo_ref is not None:
        rows = jnp.concatenate([rows, halo_ref[0]], axis=0)

    def window(kh, kw):
        if stride == 1:
            win = rows[kh:kh + TOH, kw:kw + OW, :]
        else:
            win = rows[kh:kh + (TOH - 1) * stride + 1:stride,
                       kw:kw + (OW - 1) * stride + 1:stride, :]
        return win.reshape(TOH * OW, Cin)

    if merge_taps:
        # One MXU contraction with K = KH*KW*Cin (9x deeper than per-tap for a
        # 3x3 conv).  The lane-concat is done in f32 (layout-friendly) and cast
        # back to bf16 for the MXU -- bf16 -> f32 -> bf16 is lossless.
        cols = [window(kh, kw).astype(jnp.float32)
                for kh in range(KH) for kw in range(KW)]
        lhs = jnp.concatenate(cols, axis=1).astype(jnp.bfloat16)
        acc = jnp.dot(lhs, w_ref[...], preferred_element_type=jnp.float32)
    else:
        # Large Cin: K = Cin per tap is already MXU-deep; avoid materialising a
        # KH*KW-times-larger im2col tile and accumulate per tap instead.
        # TODO(synk): sub-tile the M rows here if the f32 accumulator ever
        # becomes the live-range bottleneck for very large tiles.
        acc = jnp.zeros((TOH * OW, w_ref.shape[-1]), jnp.float32)
        for kh in range(KH):
            for kw in range(KW):
                k0 = (kh * KW + kw) * Cin
                acc = acc + jnp.dot(window(kh, kw), w_ref[k0:k0 + Cin, :],
                                    preferred_element_type=jnp.float32)

    conv_ref[0] = acc.astype(conv_ref.dtype)

    # BatchNorm partial statistics straight from the fresh f32 accumulator:
    # per-tile channel sum and mean-shifted sum of squares (stable combine).
    s1 = jnp.sum(acc, axis=0, keepdims=True)                 # (1, TCO)
    mu = s1 * (1.0 / (TOH * OW))
    d = acc - mu
    ssd = jnp.sum(d * d, axis=0, keepdims=True)              # (1, TCO)
    stats_ref[0, 0] = jnp.concatenate([s1, ssd], axis=0)     # (2, TCO)


def _make_conv_kernel(has_halo, **kw):
    body = functools.partial(_conv_bnstats_body, **kw)
    if has_halo:
        def kernel(x_ref, halo_ref, w_ref, conv_ref, stats_ref):
            body(x_ref, halo_ref, w_ref, conv_ref, stats_ref)
    else:
        def kernel(x_ref, w_ref, conv_ref, stats_ref):
            body(x_ref, None, w_ref, conv_ref, stats_ref)
    return kernel


# ---------------------------------------------------------------------------
# Kernel 2: normalize + LeakyReLU, writing the final NCHW-major output
# directly (unpadded channels, lane-dense TOH*OW minor dim).
# scale = gamma * rsqrt(var + eps), shift = beta - mean * scale (f32, per ch).
# ---------------------------------------------------------------------------
def _bn_lrelu_kernel(x_ref, scale_ref, shift_ref, o_ref, *, slope, cout):
    # x_ref: (1, TM, Cpad) bf16; scale/shift: (1, Cpad) f32; o_ref: (1, cout, TM) f32
    y = x_ref[0].astype(jnp.float32) * scale_ref[...] + shift_ref[...]
    y = jnp.where(y >= 0, y, slope * y)
    # Channel-major store: padded channels (cout..Cpad) never reach HBM and the
    # minor (TM) dim stays a multiple of 128 -> unmasked, lane-dense vst.
    o_ref[0] = jnp.transpose(y)[:cout, :]


def conv2d_batch_relu(x, weight, gamma, beta, *, stride, padding,
                      eps=1e-5, slope=0.1):
    """x: [N, Cin, H, W] (NCHW). weight: [Cout, Cin, KH, KW]. Returns NCHW f32.

    Matches Conv2dBatchReLU.forward: Conv2d(bias=False) -> BatchNorm2d in
    training mode (batch statistics, biased variance) -> LeakyReLU(0.1).
    """
    N, Cin, H, W = x.shape
    Cout, _, KH, KW = weight.shape
    OH = (H + 2 * padding - KH) // stride + 1
    OW = (W + 2 * padding - KW) // stride + 1
    M = N * OH * OW
    Cpad = _round_up(Cout, 128)
    Hp, Wp = H + 2 * padding, W + 2 * padding

    # Generation-aware budgets (v7x: 64 MiB VMEM -> smaller tiles & limit).
    vmem_cap = _vmem_capacity_bytes()
    vmem_limit = min(int(vmem_cap * 0.7), 100 * 1024 * 1024)
    target_rows = 512 if vmem_cap <= 64 * 1024 * 1024 else 1024

    TOH = _pick_oh_tile(OH, OW, target_rows)
    n_t = OH // TOH
    TCO = 256 if Cpad % 256 == 0 else 128   # 256 fills the v6e/v7x MXU; v5e uses 128
    n_co = Cpad // TCO
    halo_rows = max(KH - stride, 0)
    merge_taps = (KH * KW * Cin) <= 1024    # deep-K merge only while im2col stays small

    # TODO(synk): the NCHW->NHWC transpose + zero pad below are XLA pre-passes
    # over the input; they could be folded into the kernel with boundary-masked
    # halo loads if this pre-pass ever dominates.
    x_nhwc = jnp.transpose(x, (0, 2, 3, 1)).astype(jnp.bfloat16)
    xp = jnp.pad(x_nhwc, ((0, 0), (padding, padding), (padding, padding), (0, 0)))

    inputs = [xp]
    in_specs = [pl.BlockSpec((1, TOH * stride, Wp, Cin),
                             lambda n, t, co: (n, t, 0, 0))]

    # Bottom halo rows for each OH tile: tile t needs padded input rows
    # [t*TOH*stride, t*TOH*stride + TOH*stride + KH - stride); the first
    # TOH*stride come from the main block, the last (KH - stride) from here.
    if halo_rows > 0:
        halo = jnp.concatenate(
            [xp[:, (t + 1) * TOH * stride:(t + 1) * TOH * stride + halo_rows]
             for t in range(n_t)], axis=1)            # (N, n_t*halo_rows, Wp, Cin)
        inputs.append(halo)
        in_specs.append(pl.BlockSpec((1, halo_rows, Wp, Cin),
                                     lambda n, t, co: (n, t, 0, 0)))

    # Weights in im2col order: row index = (kh*KW + kw)*Cin + cin.
    w2d = jnp.transpose(weight, (2, 3, 1, 0)).reshape(KH * KW * Cin, Cout)
    w2d = jnp.pad(w2d, ((0, 0), (0, Cpad - Cout))).astype(jnp.bfloat16)
    inputs.append(w2d)
    in_specs.append(pl.BlockSpec((KH * KW * Cin, TCO), lambda n, t, co: (0, co)))

    conv_kernel = _make_conv_kernel(halo_rows > 0, KH=KH, KW=KW, stride=stride,
                                    TOH=TOH, OW=OW, Cin=Cin,
                                    merge_taps=merge_taps)
    conv, stats = pl.pallas_call(
        conv_kernel,
        grid=(N, n_t, n_co),
        in_specs=in_specs,
        out_specs=(
            pl.BlockSpec((1, TOH * OW, TCO), lambda n, t, co: (n, t, co)),
            pl.BlockSpec((1, 1, 2, TCO), lambda n, t, co: (n, t, 0, co)),
        ),
        out_shape=(
            jax.ShapeDtypeStruct((N, OH * OW, Cpad), jnp.bfloat16),
            jax.ShapeDtypeStruct((N, n_t, 2, Cpad), jnp.float32),
        ),
        compiler_params=pltpu.CompilerParams(
            dimension_semantics=("parallel", "parallel", "parallel"),
            vmem_limit_bytes=vmem_limit),
    )(*inputs)

    # Tiny O(Cout) reduction: combine per-tile (sum, mean-shifted ssd) with the
    # parallel-variance formula (training-mode BN: biased variance).
    cnt = float(TOH * OW)
    s1 = stats[:, :, 0, :]                            # (N, n_t, Cpad)
    ssd = stats[:, :, 1, :]
    mean = jnp.sum(s1, axis=(0, 1)) / M
    tile_mean = s1 / cnt
    var = (jnp.sum(ssd, axis=(0, 1))
           + cnt * jnp.sum((tile_mean - mean) ** 2, axis=(0, 1))) / M
    var = jnp.maximum(var, 0.0)
    gamma_p = jnp.pad(gamma.astype(jnp.float32), (0, Cpad - Cout))
    beta_p = jnp.pad(beta.astype(jnp.float32), (0, Cpad - Cout))
    scale = gamma_p * lax.rsqrt(var + eps)
    shift = beta_p - mean * scale

    bn_kernel = functools.partial(_bn_lrelu_kernel, slope=slope, cout=Cout)
    out3 = pl.pallas_call(
        bn_kernel,
        grid=(N, n_t),
        in_specs=[
            pl.BlockSpec((1, TOH * OW, Cpad), lambda n, t: (n, t, 0)),
            pl.BlockSpec((1, Cpad), lambda n, t: (0, 0)),
            pl.BlockSpec((1, Cpad), lambda n, t: (0, 0)),
        ],
        out_specs=pl.BlockSpec((1, Cout, TOH * OW), lambda n, t: (n, 0, t)),
        out_shape=jax.ShapeDtypeStruct((N, Cout, OH * OW), jnp.float32),
        compiler_params=pltpu.CompilerParams(
            dimension_semantics=("parallel", "parallel"),
            vmem_limit_bytes=vmem_limit),
    )(conv, scale.reshape(1, Cpad), shift.reshape(1, Cpad))

    # Free (contiguous) reshape to NCHW.
    return out3.reshape(N, Cout, OH, OW)


def _reference(x, weight, gamma, beta, *, stride, padding, eps=1e-5, slope=0.1):
    """Pure-JAX reference mirroring the PyTorch forward (training-mode BN)."""
    conv = lax.conv_general_dilated(
        x, weight, window_strides=(stride, stride),
        padding=[(padding, padding), (padding, padding)],
        dimension_numbers=("NCHW", "OIHW", "NCHW"))
    mean = jnp.mean(conv, axis=(0, 2, 3), keepdims=True)
    var = jnp.mean((conv - mean) ** 2, axis=(0, 2, 3), keepdims=True)
    y = (conv - mean) * lax.rsqrt(var + eps)
    y = y * gamma.reshape(1, -1, 1, 1) + beta.reshape(1, -1, 1, 1)
    return jnp.where(y >= 0, y, slope * y)


if __name__ == "__main__":
    # Small shapes consistent with the module: NCHW input, 3x3 conv, stride 1, pad 1.
    N, Cin, H, W = 2, 4, 16, 16
    Cout, KH, KW = 8, 3, 3
    stride, padding = 1, 1

    key = jax.random.PRNGKey(0)
    kx, kw, kg, kb = jax.random.split(key, 4)
    x = jax.random.normal(kx, (N, Cin, H, W), dtype=jnp.float32)
    weight = jax.random.normal(kw, (Cout, Cin, KH, KW), dtype=jnp.float32) * 0.1
    gamma = 1.0 + 0.1 * jax.random.normal(kg, (Cout,), dtype=jnp.float32)
    beta = 0.1 * jax.random.normal(kb, (Cout,), dtype=jnp.float32)

    out = conv2d_batch_relu(x, weight, gamma, beta,
                            stride=stride, padding=padding)
    out = jax.block_until_ready(out)

    ref = _reference(x, weight, gamma, beta, stride=stride, padding=padding)
    assert out.shape == (N, Cout, H, W)
    assert jnp.allclose(out, ref, rtol=5e-2, atol=5e-2)

    print("KERNEL_OK")
</pallas_src>

<mosaic_0001>
module attributes {stable_mosaic.version = 11 : i64} {
  func.func @kernel(%arg0: i32, %arg1: i32, %arg2: i32, %arg3: memref<1x16x18x4xbf16, #tpu.memory_space<vmem>>, %arg4: memref<1x2x18x4xbf16, #tpu.memory_space<vmem>>, %arg5: memref<36x128xbf16, #tpu.memory_space<vmem>>, %arg6: memref<1x256x128xbf16, #tpu.memory_space<vmem>>, %arg7: memref<1x1x2x128xf32, #tpu.memory_space<vmem>>) attributes {dimension_semantics = [#tpu.dimension_semantics<parallel>, #tpu.dimension_semantics<parallel>, #tpu.dimension_semantics<parallel>], iteration_bounds = array<i64: 2, 1, 1>, scalar_prefetch = 0 : i64, scratch_operands = 0 : i64, tpu.core_type = #tpu.core_type<tc>, window_params = [{transform_indices = @transform_0, window_bounds = array<i64: 1, 16, 18, 4>}, {transform_indices = @transform_1, window_bounds = array<i64: 1, 2, 18, 4>}, {transform_indices = @transform_2, window_bounds = array<i64: 36, 128>}, {transform_indices = @transform_3, window_bounds = array<i64: 1, 256, 128>}, {transform_indices = @transform_4, window_bounds = array<i64: 1, 1, 2, 128>}]} {
    %c0 = arith.constant 0 : index
    %c0_0 = arith.constant 0 : index
    %c0_1 = arith.constant 0 : index
    %c0_2 = arith.constant 0 : index
    %0 = vector.load %arg3[%c0, %c0_0, %c0_1, %c0_2] : memref<1x16x18x4xbf16, #tpu.memory_space<vmem>>, vector<1x16x18x4xbf16>
    %1 = vector.shape_cast %0 : vector<1x16x18x4xbf16> to vector<16x18x4xbf16>
    %c0_3 = arith.constant 0 : index
    %c0_4 = arith.constant 0 : index
    %c0_5 = arith.constant 0 : index
    %c0_6 = arith.constant 0 : index
    %2 = vector.load %arg4[%c0_3, %c0_4, %c0_5, %c0_6] : memref<1x2x18x4xbf16, #tpu.memory_space<vmem>>, vector<1x2x18x4xbf16>
    %3 = vector.shape_cast %2 : vector<1x2x18x4xbf16> to vector<2x18x4xbf16>
    %4 = tpu.concatenate %1, %3 in 0 : vector<16x18x4xbf16>, vector<2x18x4xbf16> -> vector<18x18x4xbf16>
    %5 = vector.extract_strided_slice %4 {offsets = [0, 0, 0], sizes = [16, 16, 4], strides = [1, 1, 1]} : vector<18x18x4xbf16> to vector<16x16x4xbf16>
    %6 = vector.shape_cast %5 : vector<16x16x4xbf16> to vector<256x4xbf16>
    %7 = arith.extf %6 : vector<256x4xbf16> to vector<256x4xf32>
    %8 = vector.extract_strided_slice %4 {offsets = [0, 1, 0], sizes = [16, 16, 4], strides = [1, 1, 1]} : vector<18x18x4xbf16> to vector<16x16x4xbf16>
    %9 = vector.shape_cast %8 : vector<16x16x4xbf16> to vector<256x4xbf16>
    %10 = arith.extf %9 : vector<256x4xbf16> to vector<256x4xf32>
    %11 = vector.extract_strided_slice %4 {offsets = [0, 2, 0], sizes = [16, 16, 4], strides = [1, 1, 1]} : vector<18x18x4xbf16> to vector<16x16x4xbf16>
    %12 = vector.shape_cast %11 : vector<16x16x4xbf16> to vector<256x4xbf16>
    %13 = arith.extf %12 : vector<256x4xbf16> to vector<256x4xf32>
    %14 = vector.extract_strided_slice %4 {offsets = [1, 0, 0], sizes = [16, 16, 4], strides = [1, 1, 1]} : vector<18x18x4xbf16> to vector<16x16x4xbf16>
    %15 = vector.shape_cast %14 : vector<16x16x4xbf16> to vector<256x4xbf16>
    %16 = arith.extf %15 : vector<256x4xbf16> to vector<256x4xf32>
    %17 = vector.extract_strided_slice %4 {offsets = [1, 1, 0], sizes = [16, 16, 4], strides = [1, 1, 1]} : vector<18x18x4xbf16> to vector<16x16x4xbf16>
    %18 = vector.shape_cast %17 : vector<16x16x4xbf16> to vector<256x4xbf16>
    %19 = arith.extf %18 : vector<256x4xbf16> to vector<256x4xf32>
    %20 = vector.extract_strided_slice %4 {offsets = [1, 2, 0], sizes = [16, 16, 4], strides = [1, 1, 1]} : vector<18x18x4xbf16> to vector<16x16x4xbf16>
    %21 = vector.shape_cast %20 : vector<16x16x4xbf16> to vector<256x4xbf16>
    %22 = arith.extf %21 : vector<256x4xbf16> to vector<256x4xf32>
    %23 = vector.extract_strided_slice %4 {offsets = [2, 0, 0], sizes = [16, 16, 4], strides = [1, 1, 1]} : vector<18x18x4xbf16> to vector<16x16x4xbf16>
    %24 = vector.shape_cast %23 : vector<16x16x4xbf16> to vector<256x4xbf16>
    %25 = arith.extf %24 : vector<256x4xbf16> to vector<256x4xf32>
    %26 = vector.extract_strided_slice %4 {offsets = [2, 1, 0], sizes = [16, 16, 4], strides = [1, 1, 1]} : vector<18x18x4xbf16> to vector<16x16x4xbf16>
    %27 = vector.shape_cast %26 : vector<16x16x4xbf16> to vector<256x4xbf16>
    %28 = arith.extf %27 : vector<256x4xbf16> to vector<256x4xf32>
    %29 = vector.extract_strided_slice %4 {offsets = [2, 2, 0], sizes = [16, 16, 4], strides = [1, 1, 1]} : vector<18x18x4xbf16> to vector<16x16x4xbf16>
    %30 = vector.shape_cast %29 : vector<16x16x4xbf16> to vector<256x4xbf16>
    %31 = arith.extf %30 : vector<256x4xbf16> to vector<256x4xf32>
    %32 = tpu.concatenate %7, %10, %13, %16, %19, %22, %25, %28, %31 in 1 : vector<256x4xf32>, vector<256x4xf32>, vector<256x4xf32>, vector<256x4xf32>, vector<256x4xf32>, vector<256x4xf32>, vector<256x4xf32>, vector<256x4xf32>, vector<256x4xf32> -> vector<256x36xf32>
    %33 = arith.truncf %32 : vector<256x36xf32> to vector<256x36xbf16>
    %c0_7 = arith.constant 0 : index
    %c0_8 = arith.constant 0 : index
    %34 = vector.load %arg5[%c0_7, %c0_8] : memref<36x128xbf16, #tpu.memory_space<vmem>>, vector<36x128xbf16>
    %cst = arith.constant dense<0.000000e+00> : vector<256x128xf32>
    %35 = tpu.matmul %33, %34, %cst {dimension_numbers = #tpu.dot_dimension_numbers<[1], [0], [0], [1], [0, 0, 1, 1], [], []>} : vector<256x36xbf16>, vector<36x128xbf16>, vector<256x128xf32> -> vector<256x128xf32>
    %36 = arith.truncf %35 : vector<256x128xf32> to vector<256x128xbf16>
    %c0_9 = arith.constant 0 : index
    %c0_10 = arith.constant 0 : index
    %c0_11 = arith.constant 0 : index
    %37 = vector.load %arg6[%c0_9, %c0_10, %c0_11] : memref<1x256x128xbf16, #tpu.memory_space<vmem>>, vector<1x256x128xbf16>
    %38 = vector.shape_cast %37 : vector<1x256x128xbf16> to vector<256x128xbf16>
    %39 = vector.shape_cast %36 : vector<256x128xbf16> to vector<1x256x128xbf16>
    tpu.vector_store %arg6[%c0_9, %c0_10, %c0_11], %39 {strides = array<i32>} : memref<1x256x128xbf16, #tpu.memory_space<vmem>>, vector<1x256x128xbf16>,
    %cst_12 = arith.constant dense<0.000000e+00> : vector<128xf32>
    %40 = vector.multi_reduction <add>, %35, %cst_12 [0] : vector<256x128xf32> to vector<128xf32>
    %41 = vector.shape_cast %40 : vector<128xf32> to vector<1x128xf32>
    %cst_13 = arith.constant 3.906250e-03 : f32
    %42 = vector.broadcast %cst_13 : f32 to vector<1x128xf32>
    %43 = arith.mulf %41, %42 : vector<1x128xf32>
    %44 = vector.broadcast %43 : vector<1x128xf32> to vector<256x128xf32>
    %45 = arith.subf %35, %44 : vector<256x128xf32>
    %46 = arith.mulf %45, %45 : vector<256x128xf32>
    %cst_14 = arith.constant dense<0.000000e+00> : vector<128xf32>
    %47 = vector.multi_reduction <add>, %46, %cst_14 [0] : vector<256x128xf32> to vector<128xf32>
    %48 = vector.shape_cast %47 : vector<128xf32> to vector<1x128xf32>
    %49 = tpu.concatenate %41, %48 in 0 : vector<1x128xf32>, vector<1x128xf32> -> vector<2x128xf32>
    %c0_15 = arith.constant 0 : index
    %c0_16 = arith.constant 0 : index
    %c0_17 = arith.constant 0 : index
    %c0_18 = arith.constant 0 : index
    %50 = vector.load %arg7[%c0_15, %c0_16, %c0_17, %c0_18] : memref<1x1x2x128xf32, #tpu.memory_space<vmem>>, vector<1x1x2x128xf32>
    %51 = vector.shape_cast %50 : vector<1x1x2x128xf32> to vector<2x128xf32>
    %52 = vector.shape_cast %49 : vector<2x128xf32> to vector<1x1x2x128xf32>
    tpu.vector_store %arg7[%c0_15, %c0_16, %c0_17, %c0_18], %52 {strides = array<i32>} : memref<1x1x2x128xf32, #tpu.memory_space<vmem>>, vector<1x1x2x128xf32>,
    return
  }
  func.func @transform_0(%arg0: i32, %arg1: i32, %arg2: i32) -> (i32, i32, i32, i32) {
    %c0_i32 = arith.constant 0 : i32
    %c0_i32_0 = arith.constant 0 : i32
    %c0_i32_1 = arith.constant 0 : i32
    return %arg0, %arg1, %c0_i32, %c0_i32_0 : i32, i32, i32, i32
  }
  func.func @transform_1(%arg0: i32, %arg1: i32, %arg2: i32) -> (i32, i32, i32, i32) {
    %c0_i32 = arith.constant 0 : i32
    %c0_i32_0 = arith.constant 0 : i32
    %c0_i32_1 = arith.constant 0 : i32
    return %arg0, %arg1, %c0_i32, %c0_i32_0 : i32, i32, i32, i32
  }
  func.func @transform_2(%arg0: i32, %arg1: i32, %arg2: i32) -> (i32, i32) {
    %c0_i32 = arith.constant 0 : i32
    %c0_i32_0 = arith.constant 0 : i32
    return %c0_i32, %arg2 : i32, i32
  }
  func.func @transform_3(%arg0: i32, %arg1: i32, %arg2: i32) -> (i32, i32, i32) {
    %c0_i32 = arith.constant 0 : i32
    return %arg0, %arg1, %arg2 : i32, i32, i32
  }
  func.func @transform_4(%arg0: i32, %arg1: i32, %arg2: i32) -> (i32, i32, i32, i32) {
    %c0_i32 = arith.constant 0 : i32
    %c0_i32_0 = arith.constant 0 : i32
    return %arg0, %arg1, %c0_i32, %arg2 : i32, i32, i32, i32
  }
}

</mosaic_0001>

<llo_original>
// kernel: tpu_custom_call.1
$region0: #{tpu_custom_call.1}
  #allocation0 [shape = 'u32[]', space=smem, size = 0x4, offset = 0x4, fixed_abs, tag = 'smem constant byte address 0x4 - core index']
  #allocation1 [shape = 'u32[144,128]{1,0:T(1,128)}', space=vmem, size = 0x12000, scoped, tag = 'internal scratch']
  %s0 = inlined_call_operand.vmem [shape: bf16[2,18,18,4], index: 0, kind: input, shape index: {}]
  %s1 = inlined_call_operand.vmem [shape: bf16[2,2,18,4], index: 1, kind: input, shape index: {}]
  %s2 = inlined_call_operand.vmem [shape: bf16[36,128], index: 2, kind: input, shape index: {}]
  %s3 = inlined_call_operand.hbm [shape: bf16[2,256,128], index: 3, kind: output, shape index: {0}]
  %s4 = inlined_call_operand.hbm [shape: f32[2,1,2,128], index: 4, kind: output, shape index: {1}]
  %5 = xla_tuple %s3, %s4
  %s6 = sld [smem:[#allocation0]]
  $region53: #{tpu_custom_call.1} parent=0
    _
  %s8 = ssub.s32 1, %s6
  %s9 = scalar_select 0, %s8, %s6
  $region1: #{tpu_custom_call.1} parent=0
    #allocation2 [shape = 'u8[131072]{0}', space=vmem, size = 0x20000, scoped, tag = 'output window, operand 0']
    #allocation3 [shape = 's32[2]{0}', space=sflag, size = 0x8, scoped, tag = 'scoped memory for tpu_custom_call.1']
    #allocation4 [shape = 'u8[2048]{0}', space=vmem, size = 0x800, scoped, tag = 'output window, operand 1']
    #allocation5 [shape = 's32[2]{0}', space=sflag, size = 0x8, scoped, tag = 'scoped memory for tpu_custom_call.1']
    %10 = vsyncpa [#allocation3], 0
    %s11 = scalar_lea.sflag [#allocation3], 1
    %12 = vsyncpa %s11, 0
    %13 = vsyncpa [#allocation5], 0
    %s14 = scalar_lea.sflag [#allocation5], 1
    %15 = vsyncpa %s14, 0
    loop: start=0, step=1, limit=4
    $region2: #{tpu_custom_call.1} parent=1 // loop_pre_header
      _
    $region3: #{tpu_custom_call.1} parent=1 // loop_header
      %s17 = sphi 0, %s21
      %p18 = scmp.ge.s32.totalorder %s17, 4
      %s24 = sphi 0, %s43
      %s25 = sphi 0, %s39
      %s26 = sphi 0, %s35
      %s27 = sphi 0, %s24
      %s28 = sphi 0, %s25
      %s29 = sphi 0, %s26
      %s30 = sphi 0, %s27
      %s31 = sphi 0, %s28
      %s32 = sphi 0, %s29
      %s48 = sphi 0, %s50
      %s51 = sphi 0, %s48
      %s52 = sphi 0, %s51
      %s68 = sphi 0, %s52
      %s76 = sphi 0, %s78
      %s79 = sphi 0, %s76
      %s80 = sphi 0, %s79
      %s96 = sphi 0, %s80
      %s102 = sphi 0, %s104
      %s105 = sphi 0, %s102
      %s106 = sphi 0, %s105
      %s122 = sphi 0, %s106
      %s132 = sphi 0, %s134
      %s135 = sphi 0, %s132
      %s136 = sphi 0, %s135
      %s152 = sphi 0, %s136
      %s162 = sphi 0, %s164
      %s165 = sphi 0, %s162
      %s166 = sphi 0, %s165
      %s182 = sphi 0, %s166
    $region4: #{tpu_custom_call.1} parent=1 // loop_header_branch
      %20 = sbr.rel (%p18) target = $region8
    $region5: #{tpu_custom_call.1} parent=1 // loop_body
      %s22 = ssub.s32 %s17, 1
      %s23 = ssub.s32 %s17, 2
      %s33 = sadd.s32 1, %s26
      %p34 = scmp.ge.s32.totalorder %s33, 1
      %s35 = scalar_select %p34, 0, %s33
      %s36 = sadd.s32 1, %s25
      %s37 = scalar_select %p34, %s36, %s25
      %p38 = scmp.ge.s32.totalorder %s37, 1
      %s39 = scalar_select %p38, 0, %s37
      %s40 = sadd.s32 1, %s24
      %s41 = scalar_select %p38, %s40, %s24
      %p42 = scmp.ge.s32.totalorder %s41, 2
      %s43 = scalar_select %p42, 0, %s41
      %s44 = ssub.s32 %s24, %s43
      %s45 = ssub.s32 %s25, %s39
      %s46 = sor.u32 %s44, %s45
      %p47 = scmp.eq.s32.totalorder %s46, 0
      %s49 = sadd.s32 %s48, 1
      %s50 = scalar_select %p47, %s48, %s49
      %p53 = pneg %p47
      %p54 = scmp.eq.s32.totalorder %s17, 1
      %p55 = por %p53, %p54
      %p56 = scmp.ne.s32.totalorder %s48, %s51
      %p57 = scmp.eq.s32.totalorder %s17, 0
      %p58 = por %p56, %p57
      %p59 = scmp.ne.s32.totalorder %s48, %s51
      %p60 = scmp.eq.s32.totalorder %s22, 1
      %p61 = por %p59, %p60
      %p62 = scmp.ne.s32.totalorder %s51, %s52
      %p63 = scmp.eq.s32.totalorder %s22, 0
      %p64 = por %p62, %p63
      %p65 = scmp.ne.s32.totalorder %s51, %s52
      %p66 = scmp.eq.s32.totalorder %s23, 1
      %p67 = por %p65, %p66
      %p69 = scmp.ne.s32.totalorder %s52, %s68
      %p70 = scmp.eq.s32.totalorder %s23, 0
      %p71 = por %p69, %p70
      %s72 = ssub.s32 %s24, %s43
      %s73 = ssub.s32 %s25, %s39
      %s74 = sor.u32 %s72, %s73
      %p75 = scmp.eq.s32.totalorder %s74, 0
      %s77 = sadd.s32 %s76, 1
      %s78 = scalar_select %p75, %s76, %s77
      %p81 = pneg %p75
      %p82 = scmp.eq.s32.totalorder %s17, 1
      %p83 = por %p81, %p82
      %p84 = scmp.ne.s32.totalorder %s76, %s79
      %p85 = scmp.eq.s32.totalorder %s17, 0
      %p86 = por %p84, %p85
      %p87 = scmp.ne.s32.totalorder %s76, %s79
      %p88 = scmp.eq.s32.totalorder %s22, 1
      %p89 = por %p87, %p88
      %p90 = scmp.ne.s32.totalorder %s79, %s80
      %p91 = scmp.eq.s32.totalorder %s22, 0
      %p92 = por %p90, %p91
      %p93 = scmp.ne.s32.totalorder %s79, %s80
      %p94 = scmp.eq.s32.totalorder %s23, 1
      %p95 = por %p93, %p94
      %p97 = scmp.ne.s32.totalorder %s80, %s96
      %p98 = scmp.eq.s32.totalorder %s23, 0
      %p99 = por %p97, %p98
      %s100 = ssub.s32 %s26, %s35
      %p101 = scmp.eq.s32.totalorder %s100, 0
      %s103 = sadd.s32 %s102, 1
      %s104 = scalar_select %p101, %s102, %s103
      %p107 = pneg %p101
      %p108 = scmp.eq.s32.totalorder %s17, 1
      %p109 = por %p107, %p108
      %p110 = scmp.ne.s32.totalorder %s102, %s105
      %p111 = scmp.eq.s32.totalorder %s17, 0
      %p112 = por %p110, %p111
      %p113 = scmp.ne.s32.totalorder %s102, %s105
      %p114 = scmp.eq.s32.totalorder %s22, 1
      %p115 = por %p113, %p114
      %p116 = scmp.ne.s32.totalorder %s105, %s106
      %p117 = scmp.eq.s32.totalorder %s22, 0
      %p118 = por %p116, %p117
      %p119 = scmp.ne.s32.totalorder %s105, %s106
      %p120 = scmp.eq.s32.totalorder %s23, 1
      %p121 = por %p119, %p120
      %p123 = scmp.ne.s32.totalorder %s106, %s122
      %p124 = scmp.eq.s32.totalorder %s23, 0
      %p125 = por %p123, %p124
      %s126 = ssub.s32 %s24, %s43
      %s127 = ssub.s32 %s25, %s39
      %s128 = sor.u32 %s126, %s127
      %s129 = ssub.s32 %s26, %s35
      %s130 = sor.u32 %s128, %s129
      %p131 = scmp.eq.s32.totalorder %s130, 0
      %s133 = sadd.s32 %s132, 1
      %s134 = scalar_select %p131, %s132, %s133
      %p137 = pneg %p131
      %p138 = scmp.eq.s32.totalorder %s17, 1
      %p139 = por %p137, %p138
      %p140 = scmp.ne.s32.totalorder %s132, %s135
      %p141 = scmp.eq.s32.totalorder %s17, 0
      %p142 = por %p140, %p141
      %p143 = scmp.ne.s32.totalorder %s132, %s135
      %p144 = scmp.eq.s32.totalorder %s22, 1
      %p145 = por %p143, %p144
      %p146 = scmp.ne.s32.totalorder %s135, %s136
      %p147 = scmp.eq.s32.totalorder %s22, 0
      %p148 = por %p146, %p147
      %p149 = scmp.ne.s32.totalorder %s135, %s136
      %p150 = scmp.eq.s32.totalorder %s23, 1
      %p151 = por %p149, %p150
      %p153 = scmp.ne.s32.totalorder %s136, %s152
      %p154 = scmp.eq.s32.totalorder %s23, 0
      %p155 = por %p153, %p154
      %s156 = ssub.s32 %s24, %s43
      %s157 = ssub.s32 %s25, %s39
      %s158 = sor.u32 %s156, %s157
      %s159 = ssub.s32 %s26, %s35
      %s160 = sor.u32 %s158, %s159
      %p161 = scmp.eq.s32.totalorder %s160, 0
      %s163 = sadd.s32 %s162, 1
      %s164 = scalar_select %p161, %s162, %s163
      %p167 = pneg %p161
      %p168 = scmp.eq.s32.totalorder %s17, 1
      %p169 = por %p167, %p168
      %p170 = scmp.ne.s32.totalorder %s162, %s165
      %p171 = scmp.eq.s32.totalorder %s17, 0
      %p172 = por %p170, %p171
      %p173 = scmp.ne.s32.totalorder %s162, %s165
      %p174 = scmp.eq.s32.totalorder %s22, 1
      %p175 = por %p173, %p174
      %p176 = scmp.ne.s32.totalorder %s165, %s166
      %p177 = scmp.eq.s32.totalorder %s22, 0
      %p178 = por %p176, %p177
      %p179 = scmp.ne.s32.totalorder %s165, %s166
      %p180 = scmp.eq.s32.totalorder %s23, 1
      %p181 = por %p179, %p180
      %p183 = scmp.ne.s32.totalorder %s166, %s182
      %p184 = scmp.eq.s32.totalorder %s23, 0
      %p185 = por %p183, %p184
      %p186 = scmp.le.s32.totalorder 1, %s17
      %p187 = scmp.lt.s32.totalorder %s17, 3
      %p188 = pnand %p186, %p187
      %p189 = pneg %p188
      // Predicated region
      $region9: #{tpu_custom_call.1} parent=5 // pred_check
        _
      $region10: #{tpu_custom_call.1} parent=5 // pred_check_branch
        %191 = sbr.rel (%p188) target = $region12
      $region11: #{tpu_custom_call.1} parent=5 // pred_region
        %s192 = ssub.s32 %s17, 1
        // Predicated region
        $region13: #{tpu_custom_call.1} parent=11 // pred_check
          %p193 = pneg %p118
        $region14: #{tpu_custom_call.1} parent=11 // pred_check_branch
          %195 = sbr.rel (%p193) target = $region16
        $region15: #{tpu_custom_call.1} parent=11 // pred_region
          %p196 = scmp.lt.s32.totalorder %s29, 0
          %s197 = scalar_select %p196, %s29, 0
          %s198 = smul.addr %s197, 4
          %s199 = scalar_lea.vmem %s2, %s198
        $region16: #{tpu_custom_call.1} parent=11 // pred_fallthru
          _
      $region12: #{tpu_custom_call.1} parent=5 // pred_fallthru
        _
      %p200 = scmp.lt.s32.totalorder %s17, 2
      // Predicated region
      $region17: #{tpu_custom_call.1} parent=5 // pred_check
        %p201 = pneg %p200
      $region18: #{tpu_custom_call.1} parent=5 // pred_check_branch
        %203 = sbr.rel (%p201) target = $region20
      $region19: #{tpu_custom_call.1} parent=5 // pred_region
        // Predicated region
        $region21: #{tpu_custom_call.1} parent=19 // pred_check
          %p204 = pneg %p58
        $region22: #{tpu_custom_call.1} parent=19 // pred_check_branch
          %206 = sbr.rel (%p204) target = $region24
        $region23: #{tpu_custom_call.1} parent=19 // pred_region
          %s207 = smul.u32 16, %s25
          %s208 = ssub.s32 18, %s207
          %p209 = scmp.lt.s32.totalorder %s208, 16
          %s210 = scalar_select %p209, %s208, 16
          %s211 = smul.u32 64, %s210
          %s212 = smul.u32 %s211, 3
          %p213 = scmp.lt.s32.totalorder %s24, 1
          %s214 = scalar_select %p213, %s24, 1
          %p215 = scmp.lt.s32.totalorder %s207, 17
          %s216 = scalar_select %p215, %s207, 17
          %s217 = smul.addr %s216, 3
          %s218 = smul.addr %s214, 54
          %s219 = sadd.s32 %s217, %s218
          %s220 = smul.addr %s219, 4
          %s221 = scalar_lea.vmem %s0, %s220
          %s222 = smul.u32 16, %s25
          %s223 = ssub.s32 18, %s222
          %p224 = scmp.lt.s32.totalorder %s223, 16
          %s225 = scalar_select %p224, %s223, 16
          %s226 = smul.u32 64, %s225
          %s227 = smul.u32 %s226, 3
        $region24: #{tpu_custom_call.1} parent=19 // pred_fallthru
          _
        // Predicated region
        $region25: #{tpu_custom_call.1} parent=19 // pred_check
          %p228 = pneg %p86
        $region26: #{tpu_custom_call.1} parent=19 // pred_check_branch
          %230 = sbr.rel (%p228) target = $region28
        $region27: #{tpu_custom_call.1} parent=19 // pred_region
          %s231 = smul.u32 2, %s25
          %p232 = scmp.lt.s32.totalorder %s24, 1
          %s233 = scalar_select %p232, %s24, 1
          %p234 = scmp.lt.s32.totalorder %s231, 1
          %s235 = scalar_select %p234, %s231, 1
          %s236 = smul.addr %s235, 3
          %s237 = smul.addr %s233, 6
          %s238 = sadd.s32 %s236, %s237
          %s239 = smul.addr %s238, 4
          %s240 = scalar_lea.vmem %s1, %s239
          %s241 = smul.u32 2, %s25
        $region28: #{tpu_custom_call.1} parent=19 // pred_fallthru
          _
      $region20: #{tpu_custom_call.1} parent=5 // pred_fallthru
        _
      %p242 = scmp.le.s32.totalorder 1, %s17
      %p243 = scmp.lt.s32.totalorder %s17, 3
      %p244 = pnand %p242, %p243
      %p245 = pneg %p244
      // Predicated region
      $region29: #{tpu_custom_call.1} parent=5 // pred_check
        _
      $region30: #{tpu_custom_call.1} parent=5 // pred_check_branch
        %247 = sbr.rel (%p244) target = $region32
      $region31: #{tpu_custom_call.1} parent=5 // pred_region
        %s248 = ssub.s32 %s17, 1
        %s249 = smul.u32 16, %s28
        %s250 = ssub.s32 18, %s249
        %p251 = scmp.lt.s32.totalorder %s250, 16
        %s252 = scalar_select %p251, %s250, 16
        %s253 = smul.u32 64, %s252
        %s254 = smul.u32 %s253, 3
        %p255 = scmp.lt.s32.totalorder %s27, 1
        %s256 = scalar_select %p255, %s27, 1
        %p257 = scmp.lt.s32.totalorder %s249, 17
        %s258 = scalar_select %p257, %s249, 17
        %s259 = smul.addr %s258, 3
        %s260 = smul.addr %s256, 54
        %s261 = sadd.s32 %s259, %s260
        %s262 = smul.addr %s261, 4
        %s263 = scalar_lea.vmem %s0, %s262
        %p264 = pneg %p64
        %p265 = pneg %p61
        %s266 = smul.u32 2, %s28
        %p267 = scmp.lt.s32.totalorder %s27, 1
        %s268 = scalar_select %p267, %s27, 1
        %p269 = scmp.lt.s32.totalorder %s266, 1
        %s270 = scalar_select %p269, %s266, 1
        %s271 = smul.addr %s270, 3
        %s272 = smul.addr %s268, 6
        %s273 = sadd.s32 %s271, %s272
        %s274 = smul.addr %s273, 4
        %s275 = scalar_lea.vmem %s1, %s274
        %p276 = pneg %p92
        %p277 = pneg %p89
        %p278 = scmp.lt.s32.totalorder %s29, 0
        %s279 = scalar_select %p278, %s29, 0
        %s280 = smul.addr %s279, 4
        %s281 = scalar_lea.vmem %s2, %s280
        %p282 = pneg %p118
        %p283 = pneg %p115
        %p284 = pneg %p148
        %p285 = pneg %p145
        %s286 = sand.u32 %s135, 1
        %s287 = scalar_lea.sflag [#allocation3], %s286
        %s288 = sand.u32 %s135, 1
        %s289 = smul.addr %s288, 128
        %s290 = scalar_lea.vmem [#allocation2], %s289
        %p291 = pneg %p178
        %p292 = pneg %p175
        %s293 = sand.u32 %s165, 1
        %s294 = scalar_lea.sflag [#allocation5], %s293
        %s295 = sand.u32 %s165, 1
        %s296 = smul.addr %s295, 2
        %s297 = scalar_lea.vmem [#allocation4], %s296
        %s298 = smul.u32 16, %s28
        %s299 = ssub.s32 18, %s298
        %p300 = scmp.lt.s32.totalorder %s299, 16
        %s301 = scalar_select %p300, %s299, 16
        %s302 = smul.u32 64, %s301
        %s303 = smul.u32 %s302, 3
        %p304 = scmp.lt.s32.totalorder %s27, 1
        %s305 = scalar_select %p304, %s27, 1
        %p306 = scmp.lt.s32.totalorder %s298, 17
        %s307 = scalar_select %p306, %s298, 17
        %s308 = smul.addr %s307, 3
        %s309 = smul.addr %s305, 54
        %s310 = sadd.s32 %s308, %s309
        %s311 = smul.addr %s310, 4
        %s312 = scalar_lea.vmem %s0, %s311
        %s313 = smul.u32 16, %s28
        %s314 = ssub.s32 18, %s313
        %p315 = scmp.lt.s32.totalorder %s314, 16
        %s316 = scalar_select %p315, %s314, 16
        %s317 = smul.u32 64, %s316
        %s318 = smul.u32 %s317, 3
        %s319 = smul.u32 2, %s28
        %p320 = scmp.lt.s32.totalorder %s27, 1
        %s321 = scalar_select %p320, %s27, 1
        %p322 = scmp.lt.s32.totalorder %s319, 1
        %s323 = scalar_select %p322, %s319, 1
        %s324 = smul.addr %s323, 3
        %s325 = smul.addr %s321, 6
        %s326 = sadd.s32 %s324, %s325
        %s327 = smul.addr %s326, 4
        %s328 = scalar_lea.vmem %s1, %s327
        %s329 = smul.u32 2, %s28
        %p330 = scmp.lt.s32.totalorder %s29, 0
        %s331 = scalar_select %p330, %s29, 0
        %s332 = smul.addr %s331, 4
        %s333 = scalar_lea.vmem %s2, %s332
        %s334 = smul.u32 32, %s28
        %v336 = vld [vmem:[%s312] sm:$0xf]
        %v337 = vld [vmem:[%s312 + $0x4] sm:$0xf]
        %v338 = vld [vmem:[%s312 + $0x8] sm:$0x1]
        %v339 = vld [vmem:[%s312 + $0xc] sm:$0xf]
        %v340 = vld [vmem:[%s312 + $0x10] sm:$0xf]
        %v341 = vld [vmem:[%s312 + $0x14] sm:$0x1]
        %v342 = vld [vmem:[%s312 + $0x18] sm:$0xf]
        %v343 = vld [vmem:[%s312 + $0x1c] sm:$0xf]
        %v344 = vld [vmem:[%s312 + $0x20] sm:$0x1]
        %v345 = vld [vmem:[%s312 + $0x24] sm:$0xf]
        %v346 = vld [vmem:[%s312 + $0x28] sm:$0xf]
        %v347 = vld [vmem:[%s312 + $0x2c] sm:$0x1]
        %v348 = vld [vmem:[%s312 + $0x30] sm:$0xf]
        %v349 = vld [vmem:[%s312 + $0x34] sm:$0xf]
        %v350 = vld [vmem:[%s312 + $0x38] sm:$0x1]
        %v351 = vld [vmem:[%s312 + $0x3c] sm:$0xf]
        %v352 = vld [vmem:[%s312 + $0x40] sm:$0xf]
        %v353 = vld [vmem:[%s312 + $0x44] sm:$0x1]
        %v354 = vld [vmem:[%s312 + $0x48] sm:$0xf]
        %v355 = vld [vmem:[%s312 + $0x4c] sm:$0xf]
        %v356 = vld [vmem:[%s312 + $0x50] sm:$0x1]
        %v357 = vld [vmem:[%s312 + $0x54] sm:$0xf]
        %v358 = vld [vmem:[%s312 + $0x58] sm:$0xf]
        %v359 = vld [vmem:[%s312 + $0x5c] sm:$0x1]
        %v360 = vld [vmem:[%s312 + $0x60] sm:$0xf]
        %v361 = vld [vmem:[%s312 + $0x64] sm:$0xf]
        %v362 = vld [vmem:[%s312 + $0x68] sm:$0x1]
        %v363 = vld [vmem:[%s312 + $0x6c] sm:$0xf]
        %v364 = vld [vmem:[%s312 + $0x70] sm:$0xf]
        %v365 = vld [vmem:[%s312 + $0x74] sm:$0x1]
        %v366 = vld [vmem:[%s312 + $0x78] sm:$0xf]
        %v367 = vld [vmem:[%s312 + $0x7c] sm:$0xf]
        %v368 = vld [vmem:[%s312 + $0x80] sm:$0x1]
        %v369 = vld [vmem:[%s312 + $0x84] sm:$0xf]
        %v370 = vld [vmem:[%s312 + $0x88] sm:$0xf]
        %v371 = vld [vmem:[%s312 + $0x8c] sm:$0x1]
        %v372 = vld [vmem:[%s312 + $0x90] sm:$0xf]
        %v373 = vld [vmem:[%s312 + $0x94] sm:$0xf]
        %v374 = vld [vmem:[%s312 + $0x98] sm:$0x1]
        %v375 = vld [vmem:[%s312 + $0x9c] sm:$0xf]
        %v376 = vld [vmem:[%s312 + $0xa0] sm:$0xf]
        %v377 = vld [vmem:[%s312 + $0xa4] sm:$0x1]
        %v378 = vld [vmem:[%s312 + $0xa8] sm:$0xf]
        %v379 = vld [vmem:[%s312 + $0xac] sm:$0xf]
        %v380 = vld [vmem:[%s312 + $0xb0] sm:$0x1]
        %v381 = vld [vmem:[%s312 + $0xb4] sm:$0xf]
        %v382 = vld [vmem:[%s312 + $0xb8] sm:$0xf]
        %v383 = vld [vmem:[%s312 + $0xbc] sm:$0x1]
        %v384 = vld [vmem:[%s328] sm:$0xf]
        %v385 = vld [vmem:[%s328 + $0x4] sm:$0xf]
        %v386 = vld [vmem:[%s328 + $0x8] sm:$0x1]
        %v387 = vld [vmem:[%s328 + $0xc] sm:$0xf]
        %v388 = vld [vmem:[%s328 + $0x10] sm:$0xf]
        %v389 = vld [vmem:[%s328 + $0x14] sm:$0x1]
        %v390 = vunpack.c.l.bf16 %v336
        %v391 = vunpack.c.l.bf16 %v337
        %v392 = vunpack.c.l.bf16 %v339
        %v393 = vunpack.c.l.bf16 %v340
        %v394 = vunpack.c.l.bf16 %v342
        %v395 = vunpack.c.l.bf16 %v343
        %v396 = vunpack.c.l.bf16 %v345
        %v397 = vunpack.c.l.bf16 %v346
        %v398 = vunpack.c.l.bf16 %v348
        %v399 = vunpack.c.l.bf16 %v349
        %v400 = vunpack.c.l.bf16 %v351
        %v401 = vunpack.c.l.bf16 %v352
        %v402 = vunpack.c.l.bf16 %v354
        %v403 = vunpack.c.l.bf16 %v355
        %v404 = vunpack.c.l.bf16 %v357
        %v405 = vunpack.c.l.bf16 %v358
        %v406 = vunpack.c.l.bf16 %v360
        %v407 = vunpack.c.l.bf16 %v361
        %v408 = vunpack.c.l.bf16 %v363
        %v409 = vunpack.c.l.bf16 %v364
        %v410 = vunpack.c.l.bf16 %v366
        %v411 = vunpack.c.l.bf16 %v367
        %v412 = vunpack.c.l.bf16 %v369
        %v413 = vunpack.c.l.bf16 %v370
        %v414 = vunpack.c.l.bf16 %v372
        %v415 = vunpack.c.l.bf16 %v373
        %v416 = vunpack.c.l.bf16 %v375
        %v417 = vunpack.c.l.bf16 %v376
        %v418 = vunpack.c.l.bf16 %v378
        %v419 = vunpack.c.l.bf16 %v379
        %v420 = vunpack.c.l.bf16 %v381
        %v421 = vunpack.c.l.bf16 %v382
        %vm422 = vsmask.f32 3328
        %vm423 = vsmask.f32 7440
        %vm424 = vmor %vm422, %vm423
        %v426 = vshrl.u32 %v336, 16
        %v428 = vrot.slane %v426, 4
        %v429 = vshll.u32 %v336, 16
        %v431 = vrot.slane %v429, 5
        %v432 = vor.u32 %v428, %v431
        %v433 = vrot.slane %v432, 4
        %v435 = vshll.u32 %v337, 16
        %v437 = vrot.slane %v435, 5
        %v438 = vsel %vm424, %v433, %v437
        %v439 = vshrl.u32 %v337, 16
        %v441 = vrot.slane %v439, 4
        %v442 = vor.u32 %v441, %v437
        %v443 = vrot.slane %v442, 4
        %v445 = vshll.u32 %v338, 16
        %v447 = vrot.slane %v445, 5
        %v448 = vsel %vm424, %v443, %v447
        %v450 = vshrl.u32 %v339, 16
        %v452 = vrot.slane %v450, 4
        %v453 = vshll.u32 %v339, 16
        %v455 = vrot.slane %v453, 5
        %v456 = vor.u32 %v452, %v455
        %v457 = vrot.slane %v456, 4
        %v459 = vshll.u32 %v340, 16
        %v461 = vrot.slane %v459, 5
        %v462 = vsel %vm424, %v457, %v461
        %v463 = vshrl.u32 %v340, 16
        %v465 = vrot.slane %v463, 4
        %v466 = vor.u32 %v465, %v461
        %v467 = vrot.slane %v466, 4
        %v469 = vshll.u32 %v341, 16
        %v471 = vrot.slane %v469, 5
        %v472 = vsel %vm424, %v467, %v471
        %v474 = vshrl.u32 %v342, 16
        %v476 = vrot.slane %v474, 4
        %v477 = vshll.u32 %v342, 16
        %v479 = vrot.slane %v477, 5
        %v480 = vor.u32 %v476, %v479
        %v481 = vrot.slane %v480, 4
        %v483 = vshll.u32 %v343, 16
        %v485 = vrot.slane %v483, 5
        %v486 = vsel %vm424, %v481, %v485
        %v487 = vshrl.u32 %v343, 16
        %v489 = vrot.slane %v487, 4
        %v490 = vor.u32 %v489, %v485
        %v491 = vrot.slane %v490, 4
        %v493 = vshll.u32 %v344, 16
        %v495 = vrot.slane %v493, 5
        %v496 = vsel %vm424, %v491, %v495
        %v498 = vshrl.u32 %v345, 16
        %v500 = vrot.slane %v498, 4
        %v501 = vshll.u32 %v345, 16
        %v503 = vrot.slane %v501, 5
        %v504 = vor.u32 %v500, %v503
        %v505 = vrot.slane %v504, 4
        %v507 = vshll.u32 %v346, 16
        %v509 = vrot.slane %v507, 5
        %v510 = vsel %vm424, %v505, %v509
        %v511 = vshrl.u32 %v346, 16
        %v513 = vrot.slane %v511, 4
        %v514 = vor.u32 %v513, %v509
        %v515 = vrot.slane %v514, 4
        %v517 = vshll.u32 %v347, 16
        %v519 = vrot.slane %v517, 5
        %v520 = vsel %vm424, %v515, %v519
        %v522 = vshrl.u32 %v348, 16
        %v524 = vrot.slane %v522, 4
        %v525 = vshll.u32 %v348, 16
        %v527 = vrot.slane %v525, 5
        %v528 = vor.u32 %v524, %v527
        %v529 = vrot.slane %v528, 4
        %v531 = vshll.u32 %v349, 16
        %v533 = vrot.slane %v531, 5
        %v534 = vsel %vm424, %v529, %v533
        %v535 = vshrl.u32 %v349, 16
        %v537 = vrot.slane %v535, 4
        %v538 = vor.u32 %v537, %v533
        %v539 = vrot.slane %v538, 4
        %v541 = vshll.u32 %v350, 16
        %v543 = vrot.slane %v541, 5
        %v544 = vsel %vm424, %v539, %v543
        %v546 = vshrl.u32 %v351, 16
        %v548 = vrot.slane %v546, 4
        %v549 = vshll.u32 %v351, 16
        %v551 = vrot.slane %v549, 5
        %v552 = vor.u32 %v548, %v551
        %v553 = vrot.slane %v552, 4
        %v555 = vshll.u32 %v352, 16
        %v557 = vrot.slane %v555, 5
        %v558 = vsel %vm424, %v553, %v557
        %v559 = vshrl.u32 %v352, 16
        %v561 = vrot.slane %v559, 4
        %v562 = vor.u32 %v561, %v557
        %v563 = vrot.slane %v562, 4
        %v565 = vshll.u32 %v353, 16
        %v567 = vrot.slane %v565, 5
        %v568 = vsel %vm424, %v563, %v567
        %v570 = vshrl.u32 %v354, 16
        %v572 = vrot.slane %v570, 4
        %v573 = vshll.u32 %v354, 16
        %v575 = vrot.slane %v573, 5
        %v576 = vor.u32 %v572, %v575
        %v577 = vrot.slane %v576, 4
        %v579 = vshll.u32 %v355, 16
        %v581 = vrot.slane %v579, 5
        %v582 = vsel %vm424, %v577, %v581
        %v583 = vshrl.u32 %v355, 16
        %v585 = vrot.slane %v583, 4
        %v586 = vor.u32 %v585, %v581
        %v587 = vrot.slane %v586, 4
        %v589 = vshll.u32 %v356, 16
        %v591 = vrot.slane %v589, 5
        %v592 = vsel %vm424, %v587, %v591
        %v594 = vshrl.u32 %v357, 16
        %v596 = vrot.slane %v594, 4
        %v597 = vshll.u32 %v357, 16
        %v599 = vrot.slane %v597, 5
        %v600 = vor.u32 %v596, %v599
        %v601 = vrot.slane %v600, 4
        %v603 = vshll.u32 %v358, 16
        %v605 = vrot.slane %v603, 5
        %v606 = vsel %vm424, %v601, %v605
        %v607 = vshrl.u32 %v358, 16
        %v609 = vrot.slane %v607, 4
        %v610 = vor.u32 %v609, %v605
        %v611 = vrot.slane %v610, 4
        %v613 = vshll.u32 %v359, 16
        %v615 = vrot.slane %v613, 5
        %v616 = vsel %vm424, %v611, %v615
        %v618 = vshrl.u32 %v360, 16
        %v620 = vrot.slane %v618, 4
        %v621 = vshll.u32 %v360, 16
        %v623 = vrot.slane %v621, 5
        %v624 = vor.u32 %v620, %v623
        %v625 = vrot.slane %v624, 4
        %v627 = vshll.u32 %v361, 16
        %v629 = vrot.slane %v627, 5
        %v630 = vsel %vm424, %v625, %v629
        %v631 = vshrl.u32 %v361, 16
        %v633 = vrot.slane %v631, 4
        %v634 = vor.u32 %v633, %v629
        %v635 = vrot.slane %v634, 4
        %v637 = vshll.u32 %v362, 16
        %v639 = vrot.slane %v637, 5
        %v640 = vsel %vm424, %v635, %v639
        %v642 = vshrl.u32 %v363, 16
        %v644 = vrot.slane %v642, 4
        %v645 = vshll.u32 %v363, 16
        %v647 = vrot.slane %v645, 5
        %v648 = vor.u32 %v644, %v647
        %v649 = vrot.slane %v648, 4
        %v651 = vshll.u32 %v364, 16
        %v653 = vrot.slane %v651, 5
        %v654 = vsel %vm424, %v649, %v653
        %v655 = vshrl.u32 %v364, 16
        %v657 = vrot.slane %v655, 4
        %v658 = vor.u32 %v657, %v653
        %v659 = vrot.slane %v658, 4
        %v661 = vshll.u32 %v365, 16
        %v663 = vrot.slane %v661, 5
        %v664 = vsel %vm424, %v659, %v663
        %v666 = vshrl.u32 %v366, 16
        %v668 = vrot.slane %v666, 4
        %v669 = vshll.u32 %v366, 16
        %v671 = vrot.slane %v669, 5
        %v672 = vor.u32 %v668, %v671
        %v673 = vrot.slane %v672, 4
        %v675 = vshll.u32 %v367, 16
        %v677 = vrot.slane %v675, 5
        %v678 = vsel %vm424, %v673, %v677
        %v679 = vshrl.u32 %v367, 16
        %v681 = vrot.slane %v679, 4
        %v682 = vor.u32 %v681, %v677
        %v683 = vrot.slane %v682, 4
        %v685 = vshll.u32 %v368, 16
        %v687 = vrot.slane %v685, 5
        %v688 = vsel %vm424, %v683, %v687
        %v690 = vshrl.u32 %v369, 16
        %v692 = vrot.slane %v690, 4
        %v693 = vshll.u32 %v369, 16
        %v695 = vrot.slane %v693, 5
        %v696 = vor.u32 %v692, %v695
        %v697 = vrot.slane %v696, 4
        %v699 = vshll.u32 %v370, 16
        %v701 = vrot.slane %v699, 5
        %v702 = vsel %vm424, %v697, %v701
        %v703 = vshrl.u32 %v370, 16
        %v705 = vrot.slane %v703, 4
        %v706 = vor.u32 %v705, %v701
        %v707 = vrot.slane %v706, 4
        %v709 = vshll.u32 %v371, 16
        %v711 = vrot.slane %v709, 5
        %v712 = vsel %vm424, %v707, %v711
        %v714 = vshrl.u32 %v372, 16
        %v716 = vrot.slane %v714, 4
        %v717 = vshll.u32 %v372, 16
        %v719 = vrot.slane %v717, 5
        %v720 = vor.u32 %v716, %v719
        %v721 = vrot.slane %v720, 4
        %v723 = vshll.u32 %v373, 16
        %v725 = vrot.slane %v723, 5
        %v726 = vsel %vm424, %v721, %v725
        %v727 = vshrl.u32 %v373, 16
        %v729 = vrot.slane %v727, 4
        %v730 = vor.u32 %v729, %v725
        %v731 = vrot.slane %v730, 4
        %v733 = vshll.u32 %v374, 16
        %v735 = vrot.slane %v733, 5
        %v736 = vsel %vm424, %v731, %v735
        %v738 = vshrl.u32 %v375, 16
        %v740 = vrot.slane %v738, 4
        %v741 = vshll.u32 %v375, 16
        %v743 = vrot.slane %v741, 5
        %v744 = vor.u32 %v740, %v743
        %v745 = vrot.slane %v744, 4
        %v747 = vshll.u32 %v376, 16
        %v749 = vrot.slane %v747, 5
        %v750 = vsel %vm424, %v745, %v749
        %v751 = vshrl.u32 %v376, 16
        %v753 = vrot.slane %v751, 4
        %v754 = vor.u32 %v753, %v749
        %v755 = vrot.slane %v754, 4
        %v757 = vshll.u32 %v377, 16
        %v759 = vrot.slane %v757, 5
        %v760 = vsel %vm424, %v755, %v759
        %v762 = vshrl.u32 %v378, 16
        %v764 = vrot.slane %v762, 4
        %v765 = vshll.u32 %v378, 16
        %v767 = vrot.slane %v765, 5
        %v768 = vor.u32 %v764, %v767
        %v769 = vrot.slane %v768, 4
        %v771 = vshll.u32 %v379, 16
        %v773 = vrot.slane %v771, 5
        %v774 = vsel %vm424, %v769, %v773
        %v775 = vshrl.u32 %v379, 16
        %v777 = vrot.slane %v775, 4
        %v778 = vor.u32 %v777, %v773
        %v779 = vrot.slane %v778, 4
        %v781 = vshll.u32 %v380, 16
        %v783 = vrot.slane %v781, 5
        %v784 = vsel %vm424, %v779, %v783
        %v786 = vshrl.u32 %v381, 16
        %v788 = vrot.slane %v786, 4
        %v789 = vshll.u32 %v381, 16
        %v791 = vrot.slane %v789, 5
        %v792 = vor.u32 %v788, %v791
        %v793 = vrot.slane %v792, 4
        %v795 = vshll.u32 %v382, 16
        %v797 = vrot.slane %v795, 5
        %v798 = vsel %vm424, %v793, %v797
        %v799 = vshrl.u32 %v382, 16
        %v801 = vrot.slane %v799, 4
        %v802 = vor.u32 %v801, %v797
        %v803 = vrot.slane %v802, 4
        %v805 = vshll.u32 %v383, 16
        %v807 = vrot.slane %v805, 5
        %v808 = vsel %vm424, %v803, %v807
        %v841 = vunpack.c.l.bf16 %v438
        %v842 = vunpack.c.l.bf16 %v448
        %v843 = vunpack.c.l.bf16 %v462
        %v844 = vunpack.c.l.bf16 %v472
        %v845 = vunpack.c.l.bf16 %v486
        %v846 = vunpack.c.l.bf16 %v496
        %v847 = vunpack.c.l.bf16 %v510
        %v848 = vunpack.c.l.bf16 %v520
        %v849 = vunpack.c.l.bf16 %v534
        %v850 = vunpack.c.l.bf16 %v544
        %v851 = vunpack.c.l.bf16 %v558
        %v852 = vunpack.c.l.bf16 %v568
        %v853 = vunpack.c.l.bf16 %v582
        %v854 = vunpack.c.l.bf16 %v592
        %v855 = vunpack.c.l.bf16 %v606
        %v856 = vunpack.c.l.bf16 %v616
        %v857 = vunpack.c.l.bf16 %v630
        %v858 = vunpack.c.l.bf16 %v640
        %v859 = vunpack.c.l.bf16 %v654
        %v860 = vunpack.c.l.bf16 %v664
        %v861 = vunpack.c.l.bf16 %v678
        %v862 = vunpack.c.l.bf16 %v688
        %v863 = vunpack.c.l.bf16 %v702
        %v864 = vunpack.c.l.bf16 %v712
        %v865 = vunpack.c.l.bf16 %v726
        %v866 = vunpack.c.l.bf16 %v736
        %v867 = vunpack.c.l.bf16 %v750
        %v868 = vunpack.c.l.bf16 %v760
        %v869 = vunpack.c.l.bf16 %v774
        %v870 = vunpack.c.l.bf16 %v784
        %v871 = vunpack.c.l.bf16 %v798
        %v872 = vunpack.c.l.bf16 %v808
        %vm921 = vcmask 1042432
        %vm922 = vcmask 1046532
        %vm923 = vmor %vm921, %vm922
        %v924 = vrot.slane %v336, 5
        %v925 = vrot.slane %v924, 4
        %v926 = vrot.slane %v337, 5
        %v927 = vsel %vm923, %v925, %v926
        %v928 = vrot.slane %v926, 4
        %v929 = vrot.slane %v338, 5
        %v930 = vsel %vm923, %v928, %v929
        %v931 = vrot.slane %v339, 5
        %v932 = vrot.slane %v931, 4
        %v933 = vrot.slane %v340, 5
        %v934 = vsel %vm923, %v932, %v933
        %v935 = vrot.slane %v933, 4
        %v936 = vrot.slane %v341, 5
        %v937 = vsel %vm923, %v935, %v936
        %v938 = vrot.slane %v342, 5
        %v939 = vrot.slane %v938, 4
        %v940 = vrot.slane %v343, 5
        %v941 = vsel %vm923, %v939, %v940
        %v942 = vrot.slane %v940, 4
        %v943 = vrot.slane %v344, 5
        %v944 = vsel %vm923, %v942, %v943
        %v945 = vrot.slane %v345, 5
        %v946 = vrot.slane %v945, 4
        %v947 = vrot.slane %v346, 5
        %v948 = vsel %vm923, %v946, %v947
        %v949 = vrot.slane %v947, 4
        %v950 = vrot.slane %v347, 5
        %v951 = vsel %vm923, %v949, %v950
        %v952 = vrot.slane %v348, 5
        %v953 = vrot.slane %v952, 4
        %v954 = vrot.slane %v349, 5
        %v955 = vsel %vm923, %v953, %v954
        %v956 = vrot.slane %v954, 4
        %v957 = vrot.slane %v350, 5
        %v958 = vsel %vm923, %v956, %v957
        %v959 = vrot.slane %v351, 5
        %v960 = vrot.slane %v959, 4
        %v961 = vrot.slane %v352, 5
        %v962 = vsel %vm923, %v960, %v961
        %v963 = vrot.slane %v961, 4
        %v964 = vrot.slane %v353, 5
        %v965 = vsel %vm923, %v963, %v964
        %v966 = vrot.slane %v354, 5
        %v967 = vrot.slane %v966, 4
        %v968 = vrot.slane %v355, 5
        %v969 = vsel %vm923, %v967, %v968
        %v970 = vrot.slane %v968, 4
        %v971 = vrot.slane %v356, 5
        %v972 = vsel %vm923, %v970, %v971
        %v973 = vrot.slane %v357, 5
        %v974 = vrot.slane %v973, 4
        %v975 = vrot.slane %v358, 5
        %v976 = vsel %vm923, %v974, %v975
        %v977 = vrot.slane %v975, 4
        %v978 = vrot.slane %v359, 5
        %v979 = vsel %vm923, %v977, %v978
        %v980 = vrot.slane %v360, 5
        %v981 = vrot.slane %v980, 4
        %v982 = vrot.slane %v361, 5
        %v983 = vsel %vm923, %v981, %v982
        %v984 = vrot.slane %v982, 4
        %v985 = vrot.slane %v362, 5
        %v986 = vsel %vm923, %v984, %v985
        %v987 = vrot.slane %v363, 5
        %v988 = vrot.slane %v987, 4
        %v989 = vrot.slane %v364, 5
        %v990 = vsel %vm923, %v988, %v989
        %v991 = vrot.slane %v989, 4
        %v992 = vrot.slane %v365, 5
        %v993 = vsel %vm923, %v991, %v992
        %v994 = vrot.slane %v366, 5
        %v995 = vrot.slane %v994, 4
        %v996 = vrot.slane %v367, 5
        %v997 = vsel %vm923, %v995, %v996
        %v998 = vrot.slane %v996, 4
        %v999 = vrot.slane %v368, 5
        %v1000 = vsel %vm923, %v998, %v999
        %v1001 = vrot.slane %v369, 5
        %v1002 = vrot.slane %v1001, 4
        %v1003 = vrot.slane %v370, 5
        %v1004 = vsel %vm923, %v1002, %v1003
        %v1005 = vrot.slane %v1003, 4
        %v1006 = vrot.slane %v371, 5
        %v1007 = vsel %vm923, %v1005, %v1006
        %v1008 = vrot.slane %v372, 5
        %v1009 = vrot.slane %v1008, 4
        %v1010 = vrot.slane %v373, 5
        %v1011 = vsel %vm923, %v1009, %v1010
        %v1012 = vrot.slane %v1010, 4
        %v1013 = vrot.slane %v374, 5
        %v1014 = vsel %vm923, %v1012, %v1013
        %v1015 = vrot.slane %v375, 5
        %v1016 = vrot.slane %v1015, 4
        %v1017 = vrot.slane %v376, 5
        %v1018 = vsel %vm923, %v1016, %v1017
        %v1019 = vrot.slane %v1017, 4
        %v1020 = vrot.slane %v377, 5
        %v1021 = vsel %vm923, %v1019, %v1020
        %v1022 = vrot.slane %v378, 5
        %v1023 = vrot.slane %v1022, 4
        %v1024 = vrot.slane %v379, 5
        %v1025 = vsel %vm923, %v1023, %v1024
        %v1026 = vrot.slane %v1024, 4
        %v1027 = vrot.slane %v380, 5
        %v1028 = vsel %vm923, %v1026, %v1027
        %v1029 = vrot.slane %v381, 5
        %v1030 = vrot.slane %v1029, 4
        %v1031 = vrot.slane %v382, 5
        %v1032 = vsel %vm923, %v1030, %v1031
        %v1033 = vrot.slane %v1031, 4
        %v1034 = vrot.slane %v383, 5
        %v1035 = vsel %vm923, %v1033, %v1034
        %v1068 = vunpack.c.l.bf16 %v927
        %v1069 = vunpack.c.l.bf16 %v930
        %v1070 = vunpack.c.l.bf16 %v934
        %v1071 = vunpack.c.l.bf16 %v937
        %v1072 = vunpack.c.l.bf16 %v941
        %v1073 = vunpack.c.l.bf16 %v944
        %v1074 = vunpack.c.l.bf16 %v948
        %v1075 = vunpack.c.l.bf16 %v951
        %v1076 = vunpack.c.l.bf16 %v955
        %v1077 = vunpack.c.l.bf16 %v958
        %v1078 = vunpack.c.l.bf16 %v962
        %v1079 = vunpack.c.l.bf16 %v965
        %v1080 = vunpack.c.l.bf16 %v969
        %v1081 = vunpack.c.l.bf16 %v972
        %v1082 = vunpack.c.l.bf16 %v976
        %v1083 = vunpack.c.l.bf16 %v979
        %v1084 = vunpack.c.l.bf16 %v983
        %v1085 = vunpack.c.l.bf16 %v986
        %v1086 = vunpack.c.l.bf16 %v990
        %v1087 = vunpack.c.l.bf16 %v993
        %v1088 = vunpack.c.l.bf16 %v997
        %v1089 = vunpack.c.l.bf16 %v1000
        %v1090 = vunpack.c.l.bf16 %v1004
        %v1091 = vunpack.c.l.bf16 %v1007
        %v1092 = vunpack.c.l.bf16 %v1011
        %v1093 = vunpack.c.l.bf16 %v1014
        %v1094 = vunpack.c.l.bf16 %v1018
        %v1095 = vunpack.c.l.bf16 %v1021
        %v1096 = vunpack.c.l.bf16 %v1025
        %v1097 = vunpack.c.l.bf16 %v1028
        %v1098 = vunpack.c.l.bf16 %v1032
        %v1099 = vunpack.c.l.bf16 %v1035
        %v1100 = vunpack.c.l.bf16 %v384
        %v1101 = vunpack.c.l.bf16 %v385
        %v1103 = vshrl.u32 %v384, 16
        %v1105 = vrot.slane %v1103, 4
        %v1106 = vshll.u32 %v384, 16
        %v1108 = vrot.slane %v1106, 5
        %v1109 = vor.u32 %v1105, %v1108
        %v1110 = vrot.slane %v1109, 4
        %v1112 = vshll.u32 %v385, 16
        %v1114 = vrot.slane %v1112, 5
        %v1115 = vsel %vm424, %v1110, %v1114
        %v1116 = vshrl.u32 %v385, 16
        %v1118 = vrot.slane %v1116, 4
        %v1119 = vor.u32 %v1118, %v1114
        %v1120 = vrot.slane %v1119, 4
        %v1122 = vshll.u32 %v386, 16
        %v1124 = vrot.slane %v1122, 5
        %v1125 = vsel %vm424, %v1120, %v1124
        %v1128 = vunpack.c.l.bf16 %v1115
        %v1129 = vunpack.c.l.bf16 %v1125
        %v1133 = vrot.slane %v384, 5
        %v1134 = vrot.slane %v1133, 4
        %v1135 = vrot.slane %v385, 5
        %v1136 = vsel %vm923, %v1134, %v1135
        %v1137 = vrot.slane %v1135, 4
        %v1138 = vrot.slane %v386, 5
        %v1139 = vsel %vm923, %v1137, %v1138
        %v1142 = vunpack.c.l.bf16 %v1136
        %v1143 = vunpack.c.l.bf16 %v1139
        %v1144 = vunpack.c.l.bf16 %v387
        %v1145 = vunpack.c.l.bf16 %v388
        %v1147 = vshrl.u32 %v387, 16
        %v1149 = vrot.slane %v1147, 4
        %v1150 = vshll.u32 %v387, 16
        %v1152 = vrot.slane %v1150, 5
        %v1153 = vor.u32 %v1149, %v1152
        %v1154 = vrot.slane %v1153, 4
        %v1156 = vshll.u32 %v388, 16
        %v1158 = vrot.slane %v1156, 5
        %v1159 = vsel %vm424, %v1154, %v1158
        %v1160 = vshrl.u32 %v388, 16
        %v1162 = vrot.slane %v1160, 4
        %v1163 = vor.u32 %v1162, %v1158
        %v1164 = vrot.slane %v1163, 4
        %v1166 = vshll.u32 %v389, 16
        %v1168 = vrot.slane %v1166, 5
        %v1169 = vsel %vm424, %v1164, %v1168
        %v1172 = vunpack.c.l.bf16 %v1159
        %v1173 = vunpack.c.l.bf16 %v1169
        %v1177 = vrot.slane %v387, 5
        %v1178 = vrot.slane %v1177, 4
        %v1179 = vrot.slane %v388, 5
        %v1180 = vsel %vm923, %v1178, %v1179
        %v1181 = vrot.slane %v1179, 4
        %v1182 = vrot.slane %v389, 5
        %v1183 = vsel %vm923, %v1181, %v1182
        %v1186 = vunpack.c.l.bf16 %v1180
        %v1187 = vunpack.c.l.bf16 %v1183
        %1220 = vrot.lane.b32.xlu0 %v841, 4
        %v1221 = vpop.permute.xlu0 %1220
        %1222 = vrot.lane.b32.xlu0 %v842, 4
        %v1223 = vpop.permute.xlu0 %1222
        %1224 = vrot.lane.b32.xlu0 %v843, 4
        %v1225 = vpop.permute.xlu0 %1224
        %1226 = vrot.lane.b32.xlu0 %v844, 4
        %v1227 = vpop.permute.xlu0 %1226
        %1228 = vrot.lane.b32.xlu0 %v845, 4
        %v1229 = vpop.permute.xlu0 %1228
        %1230 = vrot.lane.b32.xlu0 %v846, 4
        %v1231 = vpop.permute.xlu0 %1230
        %1232 = vrot.lane.b32.xlu0 %v847, 4
        %v1233 = vpop.permute.xlu0 %1232
        %1234 = vrot.lane.b32.xlu0 %v848, 4
        %v1235 = vpop.permute.xlu0 %1234
        %1236 = vrot.lane.b32.xlu0 %v849, 4
        %v1237 = vpop.permute.xlu0 %1236
        %1238 = vrot.lane.b32.xlu0 %v850, 4
        %v1239 = vpop.permute.xlu0 %1238
        %1240 = vrot.lane.b32.xlu0 %v851, 4
        %v1241 = vpop.permute.xlu0 %1240
        %1242 = vrot.lane.b32.xlu0 %v852, 4
        %v1243 = vpop.permute.xlu0 %1242
        %1244 = vrot.lane.b32.xlu0 %v853, 4
        %v1245 = vpop.permute.xlu0 %1244
        %1246 = vrot.lane.b32.xlu0 %v854, 4
        %v1247 = vpop.permute.xlu0 %1246
        %1248 = vrot.lane.b32.xlu0 %v855, 4
        %v1249 = vpop.permute.xlu0 %1248
        %1250 = vrot.lane.b32.xlu0 %v856, 4
        %v1251 = vpop.permute.xlu0 %1250
        %1252 = vrot.lane.b32.xlu0 %v857, 4
        %v1253 = vpop.permute.xlu0 %1252
        %1254 = vrot.lane.b32.xlu0 %v858, 4
        %v1255 = vpop.permute.xlu0 %1254
        %1256 = vrot.lane.b32.xlu0 %v859, 4
        %v1257 = vpop.permute.xlu0 %1256
        %1258 = vrot.lane.b32.xlu0 %v860, 4
        %v1259 = vpop.permute.xlu0 %1258
        %1260 = vrot.lane.b32.xlu0 %v861, 4
        %v1261 = vpop.permute.xlu0 %1260
        %1262 = vrot.lane.b32.xlu0 %v862, 4
        %v1263 = vpop.permute.xlu0 %1262
        %1264 = vrot.lane.b32.xlu0 %v863, 4
        %v1265 = vpop.permute.xlu0 %1264
        %1266 = vrot.lane.b32.xlu0 %v864, 4
        %v1267 = vpop.permute.xlu0 %1266
        %1268 = vrot.lane.b32.xlu0 %v865, 4
        %v1269 = vpop.permute.xlu0 %1268
        %1270 = vrot.lane.b32.xlu0 %v866, 4
        %v1271 = vpop.permute.xlu0 %1270
        %1272 = vrot.lane.b32.xlu0 %v867, 4
        %v1273 = vpop.permute.xlu0 %1272
        %1274 = vrot.lane.b32.xlu0 %v868, 4
        %v1275 = vpop.permute.xlu0 %1274
        %1276 = vrot.lane.b32.xlu0 %v869, 4
        %v1277 = vpop.permute.xlu0 %1276
        %1278 = vrot.lane.b32.xlu0 %v870, 4
        %v1279 = vpop.permute.xlu0 %1278
        %1280 = vrot.lane.b32.xlu0 %v871, 4
        %v1281 = vpop.permute.xlu0 %1280
        %1282 = vrot.lane.b32.xlu0 %v872, 4
        %v1283 = vpop.permute.xlu0 %1282
        %1348 = vrot.lane.b32.xlu0 %v1068, 8
        %v1349 = vpop.permute.xlu0 %1348
        %1350 = vrot.lane.b32.xlu0 %v1069, 8
        %v1351 = vpop.permute.xlu0 %1350
        %1352 = vrot.lane.b32.xlu0 %v1070, 8
        %v1353 = vpop.permute.xlu0 %1352
        %1354 = vrot.lane.b32.xlu0 %v1071, 8
        %v1355 = vpop.permute.xlu0 %1354
        %1356 = vrot.lane.b32.xlu0 %v1072, 8
        %v1357 = vpop.permute.xlu0 %1356
        %1358 = vrot.lane.b32.xlu0 %v1073, 8
        %v1359 = vpop.permute.xlu0 %1358
        %1360 = vrot.lane.b32.xlu0 %v1074, 8
        %v1361 = vpop.permute.xlu0 %1360
        %1362 = vrot.lane.b32.xlu0 %v1075, 8
        %v1363 = vpop.permute.xlu0 %1362
        %1364 = vrot.lane.b32.xlu0 %v1076, 8
        %v1365 = vpop.permute.xlu0 %1364
        %1366 = vrot.lane.b32.xlu0 %v1077, 8
        %v1367 = vpop.permute.xlu0 %1366
        %1368 = vrot.lane.b32.xlu0 %v1078, 8
        %v1369 = vpop.permute.xlu0 %1368
        %1370 = vrot.lane.b32.xlu0 %v1079, 8
        %v1371 = vpop.permute.xlu0 %1370
        %1372 = vrot.lane.b32.xlu0 %v1080, 8
        %v1373 = vpop.permute.xlu0 %1372
        %1374 = vrot.lane.b32.xlu0 %v1081, 8
        %v1375 = vpop.permute.xlu0 %1374
        %1376 = vrot.lane.b32.xlu0 %v1082, 8
        %v1377 = vpop.permute.xlu0 %1376
        %1378 = vrot.lane.b32.xlu0 %v1083, 8
        %v1379 = vpop.permute.xlu0 %1378
        %1380 = vrot.lane.b32.xlu0 %v1084, 8
        %v1381 = vpop.permute.xlu0 %1380
        %1382 = vrot.lane.b32.xlu0 %v1085, 8
        %v1383 = vpop.permute.xlu0 %1382
        %1384 = vrot.lane.b32.xlu0 %v1086, 8
        %v1385 = vpop.permute.xlu0 %1384
        %1386 = vrot.lane.b32.xlu0 %v1087, 8
        %v1387 = vpop.permute.xlu0 %1386
        %1388 = vrot.lane.b32.xlu0 %v1088, 8
        %v1389 = vpop.permute.xlu0 %1388
        %1390 = vrot.lane.b32.xlu0 %v1089, 8
        %v1391 = vpop.permute.xlu0 %1390
        %1392 = vrot.lane.b32.xlu0 %v1090, 8
        %v1393 = vpop.permute.xlu0 %1392
        %1394 = vrot.lane.b32.xlu0 %v1091, 8
        %v1395 = vpop.permute.xlu0 %1394
        %1396 = vrot.lane.b32.xlu0 %v1092, 8
        %v1397 = vpop.permute.xlu0 %1396
        %1398 = vrot.lane.b32.xlu0 %v1093, 8
        %v1399 = vpop.permute.xlu0 %1398
        %1400 = vrot.lane.b32.xlu0 %v1094, 8
        %v1401 = vpop.permute.xlu0 %1400
        %1402 = vrot.lane.b32.xlu0 %v1095, 8
        %v1403 = vpop.permute.xlu0 %1402
        %1404 = vrot.lane.b32.xlu0 %v1096, 8
        %v1405 = vpop.permute.xlu0 %1404
        %1406 = vrot.lane.b32.xlu0 %v1097, 8
        %v1407 = vpop.permute.xlu0 %1406
        %1408 = vrot.lane.b32.xlu0 %v1098, 8
        %v1409 = vpop.permute.xlu0 %1408
        %1410 = vrot.lane.b32.xlu0 %v1099, 8
        %v1411 = vpop.permute.xlu0 %1410
        %1476 = vrot.lane.b32.xlu0 %v392, 12
        %v1477 = vpop.permute.xlu0 %1476
        %1478 = vrot.lane.b32.xlu0 %v393, 12
        %v1479 = vpop.permute.xlu0 %1478
        %1480 = vrot.lane.b32.xlu0 %v394, 12
        %v1481 = vpop.permute.xlu0 %1480
        %1482 = vrot.lane.b32.xlu0 %v395, 12
        %v1483 = vpop.permute.xlu0 %1482
        %1484 = vrot.lane.b32.xlu0 %v396, 12
        %v1485 = vpop.permute.xlu0 %1484
        %1486 = vrot.lane.b32.xlu0 %v397, 12
        %v1487 = vpop.permute.xlu0 %1486
        %1488 = vrot.lane.b32.xlu0 %v398, 12
        %v1489 = vpop.permute.xlu0 %1488
        %1490 = vrot.lane.b32.xlu0 %v399, 12
        %v1491 = vpop.permute.xlu0 %1490
        %1492 = vrot.lane.b32.xlu0 %v400, 12
        %v1493 = vpop.permute.xlu0 %1492
        %1494 = vrot.lane.b32.xlu0 %v401, 12
        %v1495 = vpop.permute.xlu0 %1494
        %1496 = vrot.lane.b32.xlu0 %v402, 12
        %v1497 = vpop.permute.xlu0 %1496
        %1498 = vrot.lane.b32.xlu0 %v403, 12
        %v1499 = vpop.permute.xlu0 %1498
        %1500 = vrot.lane.b32.xlu0 %v404, 12
        %v1501 = vpop.permute.xlu0 %1500
        %1502 = vrot.lane.b32.xlu0 %v405, 12
        %v1503 = vpop.permute.xlu0 %1502
        %1504 = vrot.lane.b32.xlu0 %v406, 12
        %v1505 = vpop.permute.xlu0 %1504
        %1506 = vrot.lane.b32.xlu0 %v407, 12
        %v1507 = vpop.permute.xlu0 %1506
        %1508 = vrot.lane.b32.xlu0 %v408, 12
        %v1509 = vpop.permute.xlu0 %1508
        %1510 = vrot.lane.b32.xlu0 %v409, 12
        %v1511 = vpop.permute.xlu0 %1510
        %1512 = vrot.lane.b32.xlu0 %v410, 12
        %v1513 = vpop.permute.xlu0 %1512
        %1514 = vrot.lane.b32.xlu0 %v411, 12
        %v1515 = vpop.permute.xlu0 %1514
        %1516 = vrot.lane.b32.xlu0 %v412, 12
        %v1517 = vpop.permute.xlu0 %1516
        %1518 = vrot.lane.b32.xlu0 %v413, 12
        %v1519 = vpop.permute.xlu0 %1518
        %1520 = vrot.lane.b32.xlu0 %v414, 12
        %v1521 = vpop.permute.xlu0 %1520
        %1522 = vrot.lane.b32.xlu0 %v415, 12
        %v1523 = vpop.permute.xlu0 %1522
        %1524 = vrot.lane.b32.xlu0 %v416, 12
        %v1525 = vpop.permute.xlu0 %1524
        %1526 = vrot.lane.b32.xlu0 %v417, 12
        %v1527 = vpop.permute.xlu0 %1526
        %1528 = vrot.lane.b32.xlu0 %v418, 12
        %v1529 = vpop.permute.xlu0 %1528
        %1530 = vrot.lane.b32.xlu0 %v419, 12
        %v1531 = vpop.permute.xlu0 %1530
        %1532 = vrot.lane.b32.xlu0 %v420, 12
        %v1533 = vpop.permute.xlu0 %1532
        %1534 = vrot.lane.b32.xlu0 %v421, 12
        %v1535 = vpop.permute.xlu0 %1534
        %1536 = vrot.lane.b32.xlu0 %v1100, 12
        %v1537 = vpop.permute.xlu0 %1536
        %1538 = vrot.lane.b32.xlu0 %v1101, 12
        %v1539 = vpop.permute.xlu0 %1538
        %1574 = vrot.lane.b32.xlu0 %v843, 16
        %v1575 = vpop.permute.xlu0 %1574
        %1576 = vrot.lane.b32.xlu0 %v844, 16
        %v1577 = vpop.permute.xlu0 %1576
        %1578 = vrot.lane.b32.xlu0 %v845, 16
        %v1579 = vpop.permute.xlu0 %1578
        %1580 = vrot.lane.b32.xlu0 %v846, 16
        %v1581 = vpop.permute.xlu0 %1580
        %1582 = vrot.lane.b32.xlu0 %v847, 16
        %v1583 = vpop.permute.xlu0 %1582
        %1584 = vrot.lane.b32.xlu0 %v848, 16
        %v1585 = vpop.permute.xlu0 %1584
        %1586 = vrot.lane.b32.xlu0 %v849, 16
        %v1587 = vpop.permute.xlu0 %1586
        %1588 = vrot.lane.b32.xlu0 %v850, 16
        %v1589 = vpop.permute.xlu0 %1588
        %1590 = vrot.lane.b32.xlu0 %v851, 16
        %v1591 = vpop.permute.xlu0 %1590
        %1592 = vrot.lane.b32.xlu0 %v852, 16
        %v1593 = vpop.permute.xlu0 %1592
        %1594 = vrot.lane.b32.xlu0 %v853, 16
        %v1595 = vpop.permute.xlu0 %1594
        %1596 = vrot.lane.b32.xlu0 %v854, 16
        %v1597 = vpop.permute.xlu0 %1596
        %1598 = vrot.lane.b32.xlu0 %v855, 16
        %v1599 = vpop.permute.xlu0 %1598
        %1600 = vrot.lane.b32.xlu0 %v856, 16
        %v1601 = vpop.permute.xlu0 %1600
        %1602 = vrot.lane.b32.xlu0 %v857, 16
        %v1603 = vpop.permute.xlu0 %1602
        %1604 = vrot.lane.b32.xlu0 %v858, 16
        %v1605 = vpop.permute.xlu0 %1604
        %1606 = vrot.lane.b32.xlu0 %v859, 16
        %v1607 = vpop.permute.xlu0 %1606
        %1608 = vrot.lane.b32.xlu0 %v860, 16
        %v1609 = vpop.permute.xlu0 %1608
        %1610 = vrot.lane.b32.xlu0 %v861, 16
        %v1611 = vpop.permute.xlu0 %1610
        %1612 = vrot.lane.b32.xlu0 %v862, 16
        %v1613 = vpop.permute.xlu0 %1612
        %1614 = vrot.lane.b32.xlu0 %v863, 16
        %v1615 = vpop.permute.xlu0 %1614
        %1616 = vrot.lane.b32.xlu0 %v864, 16
        %v1617 = vpop.permute.xlu0 %1616
        %1618 = vrot.lane.b32.xlu0 %v865, 16
        %v1619 = vpop.permute.xlu0 %1618
        %1620 = vrot.lane.b32.xlu0 %v866, 16
        %v1621 = vpop.permute.xlu0 %1620
        %1622 = vrot.lane.b32.xlu0 %v867, 16
        %v1623 = vpop.permute.xlu0 %1622
        %1624 = vrot.lane.b32.xlu0 %v868, 16
        %v1625 = vpop.permute.xlu0 %1624
        %1626 = vrot.lane.b32.xlu0 %v869, 16
        %v1627 = vpop.permute.xlu0 %1626
        %1628 = vrot.lane.b32.xlu0 %v870, 16
        %v1629 = vpop.permute.xlu0 %1628
        %1630 = vrot.lane.b32.xlu0 %v871, 16
        %v1631 = vpop.permute.xlu0 %1630
        %1632 = vrot.lane.b32.xlu0 %v872, 16
        %v1633 = vpop.permute.xlu0 %1632
        %1634 = vrot.lane.b32.xlu0 %v1128, 16
        %v1635 = vpop.permute.xlu0 %1634
        %1636 = vrot.lane.b32.xlu0 %v1129, 16
        %v1637 = vpop.permute.xlu0 %1636
        %1672 = vrot.lane.b32.xlu0 %v1070, 20
        %v1673 = vpop.permute.xlu0 %1672
        %1674 = vrot.lane.b32.xlu0 %v1071, 20
        %v1675 = vpop.permute.xlu0 %1674
        %1676 = vrot.lane.b32.xlu0 %v1072, 20
        %v1677 = vpop.permute.xlu0 %1676
        %1678 = vrot.lane.b32.xlu0 %v1073, 20
        %v1679 = vpop.permute.xlu0 %1678
        %1680 = vrot.lane.b32.xlu0 %v1074, 20
        %v1681 = vpop.permute.xlu0 %1680
        %1682 = vrot.lane.b32.xlu0 %v1075, 20
        %v1683 = vpop.permute.xlu0 %1682
        %1684 = vrot.lane.b32.xlu0 %v1076, 20
        %v1685 = vpop.permute.xlu0 %1684
        %1686 = vrot.lane.b32.xlu0 %v1077, 20
        %v1687 = vpop.permute.xlu0 %1686
        %1688 = vrot.lane.b32.xlu0 %v1078, 20
        %v1689 = vpop.permute.xlu0 %1688
        %1690 = vrot.lane.b32.xlu0 %v1079, 20
        %v1691 = vpop.permute.xlu0 %1690
        %1692 = vrot.lane.b32.xlu0 %v1080, 20
        %v1693 = vpop.permute.xlu0 %1692
        %1694 = vrot.lane.b32.xlu0 %v1081, 20
        %v1695 = vpop.permute.xlu0 %1694
        %1696 = vrot.lane.b32.xlu0 %v1082, 20
        %v1697 = vpop.permute.xlu0 %1696
        %1698 = vrot.lane.b32.xlu0 %v1083, 20
        %v1699 = vpop.permute.xlu0 %1698
        %1700 = vrot.lane.b32.xlu0 %v1084, 20
        %v1701 = vpop.permute.xlu0 %1700
        %1702 = vrot.lane.b32.xlu0 %v1085, 20
        %v1703 = vpop.permute.xlu0 %1702
        %1704 = vrot.lane.b32.xlu0 %v1086, 20
        %v1705 = vpop.permute.xlu0 %1704
        %1706 = vrot.lane.b32.xlu0 %v1087, 20
        %v1707 = vpop.permute.xlu0 %1706
        %1708 = vrot.lane.b32.xlu0 %v1088, 20
        %v1709 = vpop.permute.xlu0 %1708
        %1710 = vrot.lane.b32.xlu0 %v1089, 20
        %v1711 = vpop.permute.xlu0 %1710
        %1712 = vrot.lane.b32.xlu0 %v1090, 20
        %v1713 = vpop.permute.xlu0 %1712
        %1714 = vrot.lane.b32.xlu0 %v1091, 20
        %v1715 = vpop.permute.xlu0 %1714
        %1716 = vrot.lane.b32.xlu0 %v1092, 20
        %v1717 = vpop.permute.xlu0 %1716
        %1718 = vrot.lane.b32.xlu0 %v1093, 20
        %v1719 = vpop.permute.xlu0 %1718
        %1720 = vrot.lane.b32.xlu0 %v1094, 20
        %v1721 = vpop.permute.xlu0 %1720
        %1722 = vrot.lane.b32.xlu0 %v1095, 20
        %v1723 = vpop.permute.xlu0 %1722
        %1724 = vrot.lane.b32.xlu0 %v1096, 20
        %v1725 = vpop.permute.xlu0 %1724
        %1726 = vrot.lane.b32.xlu0 %v1097, 20
        %v1727 = vpop.permute.xlu0 %1726
        %1728 = vrot.lane.b32.xlu0 %v1098, 20
        %v1729 = vpop.permute.xlu0 %1728
        %1730 = vrot.lane.b32.xlu0 %v1099, 20
        %v1731 = vpop.permute.xlu0 %1730
        %1732 = vrot.lane.b32.xlu0 %v1142, 20
        %v1733 = vpop.permute.xlu0 %1732
        %1734 = vrot.lane.b32.xlu0 %v1143, 20
        %v1735 = vpop.permute.xlu0 %1734
        %1770 = vrot.lane.b32.xlu0 %v394, 24
        %v1771 = vpop.permute.xlu0 %1770
        %1772 = vrot.lane.b32.xlu0 %v395, 24
        %v1773 = vpop.permute.xlu0 %1772
        %1774 = vrot.lane.b32.xlu0 %v396, 24
        %v1775 = vpop.permute.xlu0 %1774
        %1776 = vrot.lane.b32.xlu0 %v397, 24
        %v1777 = vpop.permute.xlu0 %1776
        %1778 = vrot.lane.b32.xlu0 %v398, 24
        %v1779 = vpop.permute.xlu0 %1778
        %1780 = vrot.lane.b32.xlu0 %v399, 24
        %v1781 = vpop.permute.xlu0 %1780
        %1782 = vrot.lane.b32.xlu0 %v400, 24
        %v1783 = vpop.permute.xlu0 %1782
        %1784 = vrot.lane.b32.xlu0 %v401, 24
        %v1785 = vpop.permute.xlu0 %1784
        %1786 = vrot.lane.b32.xlu0 %v402, 24
        %v1787 = vpop.permute.xlu0 %1786
        %1788 = vrot.lane.b32.xlu0 %v403, 24
        %v1789 = vpop.permute.xlu0 %1788
        %1790 = vrot.lane.b32.xlu0 %v404, 24
        %v1791 = vpop.permute.xlu0 %1790
        %1792 = vrot.lane.b32.xlu0 %v405, 24
        %v1793 = vpop.permute.xlu0 %1792
        %1794 = vrot.lane.b32.xlu0 %v406, 24
        %v1795 = vpop.permute.xlu0 %1794
        %1796 = vrot.lane.b32.xlu0 %v407, 24
        %v1797 = vpop.permute.xlu0 %1796
        %1798 = vrot.lane.b32.xlu0 %v408, 24
        %v1799 = vpop.permute.xlu0 %1798
        %1800 = vrot.lane.b32.xlu0 %v409, 24
        %v1801 = vpop.permute.xlu0 %1800
        %1802 = vrot.lane.b32.xlu0 %v410, 24
        %v1803 = vpop.permute.xlu0 %1802
        %1804 = vrot.lane.b32.xlu0 %v411, 24
        %v1805 = vpop.permute.xlu0 %1804
        %1806 = vrot.lane.b32.xlu0 %v412, 24
        %v1807 = vpop.permute.xlu0 %1806
        %1808 = vrot.lane.b32.xlu0 %v413, 24
        %v1809 = vpop.permute.xlu0 %1808
        %1810 = vrot.lane.b32.xlu0 %v414, 24
        %v1811 = vpop.permute.xlu0 %1810
        %1812 = vrot.lane.b32.xlu0 %v415, 24
        %v1813 = vpop.permute.xlu0 %1812
        %1814 = vrot.lane.b32.xlu0 %v416, 24
        %v1815 = vpop.permute.xlu0 %1814
        %1816 = vrot.lane.b32.xlu0 %v417, 24
        %v1817 = vpop.permute.xlu0 %1816
        %1818 = vrot.lane.b32.xlu0 %v418, 24
        %v1819 = vpop.permute.xlu0 %1818
        %1820 = vrot.lane.b32.xlu0 %v419, 24
        %v1821 = vpop.permute.xlu0 %1820
        %1822 = vrot.lane.b32.xlu0 %v420, 24
        %v1823 = vpop.permute.xlu0 %1822
        %1824 = vrot.lane.b32.xlu0 %v421, 24
        %v1825 = vpop.permute.xlu0 %1824
        %1826 = vrot.lane.b32.xlu0 %v1100, 24
        %v1827 = vpop.permute.xlu0 %1826
        %1828 = vrot.lane.b32.xlu0 %v1101, 24
        %v1829 = vpop.permute.xlu0 %1828
        %1830 = vrot.lane.b32.xlu0 %v1144, 24
        %v1831 = vpop.permute.xlu0 %1830
        %1832 = vrot.lane.b32.xlu0 %v1145, 24
        %v1833 = vpop.permute.xlu0 %1832
        %1868 = vrot.lane.b32.xlu0 %v845, 28
        %v1869 = vpop.permute.xlu0 %1868
        %1870 = vrot.lane.b32.xlu0 %v846, 28
        %v1871 = vpop.permute.xlu0 %1870
        %1872 = vrot.lane.b32.xlu0 %v847, 28
        %v1873 = vpop.permute.xlu0 %1872
        %1874 = vrot.lane.b32.xlu0 %v848, 28
        %v1875 = vpop.permute.xlu0 %1874
        %1876 = vrot.lane.b32.xlu0 %v849, 28
        %v1877 = vpop.permute.xlu0 %1876
        %1878 = vrot.lane.b32.xlu0 %v850, 28
        %v1879 = vpop.permute.xlu0 %1878
        %1880 = vrot.lane.b32.xlu0 %v851, 28
        %v1881 = vpop.permute.xlu0 %1880
        %1882 = vrot.lane.b32.xlu0 %v852, 28
        %v1883 = vpop.permute.xlu0 %1882
        %1884 = vrot.lane.b32.xlu0 %v853, 28
        %v1885 = vpop.permute.xlu0 %1884
        %1886 = vrot.lane.b32.xlu0 %v854, 28
        %v1887 = vpop.permute.xlu0 %1886
        %1888 = vrot.lane.b32.xlu0 %v855, 28
        %v1889 = vpop.permute.xlu0 %1888
        %1890 = vrot.lane.b32.xlu0 %v856, 28
        %v1891 = vpop.permute.xlu0 %1890
        %1892 = vrot.lane.b32.xlu0 %v857, 28
        %v1893 = vpop.permute.xlu0 %1892
        %1894 = vrot.lane.b32.xlu0 %v858, 28
        %v1895 = vpop.permute.xlu0 %1894
        %1896 = vrot.lane.b32.xlu0 %v859, 28
        %v1897 = vpop.permute.xlu0 %1896
        %1898 = vrot.lane.b32.xlu0 %v860, 28
        %v1899 = vpop.permute.xlu0 %1898
        %1900 = vrot.lane.b32.xlu0 %v861, 28
        %v1901 = vpop.permute.xlu0 %1900
        %1902 = vrot.lane.b32.xlu0 %v862, 28
        %v1903 = vpop.permute.xlu0 %1902
        %1904 = vrot.lane.b32.xlu0 %v863, 28
        %v1905 = vpop.permute.xlu0 %1904
        %1906 = vrot.lane.b32.xlu0 %v864, 28
        %v1907 = vpop.permute.xlu0 %1906
        %1908 = vrot.lane.b32.xlu0 %v865, 28
        %v1909 = vpop.permute.xlu0 %1908
        %1910 = vrot.lane.b32.xlu0 %v866, 28
        %v1911 = vpop.permute.xlu0 %1910
        %1912 = vrot.lane.b32.xlu0 %v867, 28
        %v1913 = vpop.permute.xlu0 %1912
        %1914 = vrot.lane.b32.xlu0 %v868, 28
        %v1915 = vpop.permute.xlu0 %1914
        %1916 = vrot.lane.b32.xlu0 %v869, 28
        %v1917 = vpop.permute.xlu0 %1916
        %1918 = vrot.lane.b32.xlu0 %v870, 28
        %v1919 = vpop.permute.xlu0 %1918
        %1920 = vrot.lane.b32.xlu0 %v871, 28
        %v1921 = vpop.permute.xlu0 %1920
        %1922 = vrot.lane.b32.xlu0 %v872, 28
        %v1923 = vpop.permute.xlu0 %1922
        %1924 = vrot.lane.b32.xlu0 %v1128, 28
        %v1925 = vpop.permute.xlu0 %1924
        %1926 = vrot.lane.b32.xlu0 %v1129, 28
        %v1927 = vpop.permute.xlu0 %1926
        %1928 = vrot.lane.b32.xlu0 %v1172, 28
        %v1929 = vpop.permute.xlu0 %1928
        %1930 = vrot.lane.b32.xlu0 %v1173, 28
        %v1931 = vpop.permute.xlu0 %1930
        %1966 = vrot.lane.b32.xlu0 %v1072, 32
        %v1967 = vpop.permute.xlu0 %1966
        %1968 = vrot.lane.b32.xlu0 %v1073, 32
        %v1969 = vpop.permute.xlu0 %1968
        %1970 = vrot.lane.b32.xlu0 %v1074, 32
        %v1971 = vpop.permute.xlu0 %1970
        %1972 = vrot.lane.b32.xlu0 %v1075, 32
        %v1973 = vpop.permute.xlu0 %1972
        %1974 = vrot.lane.b32.xlu0 %v1076, 32
        %v1975 = vpop.permute.xlu0 %1974
        %1976 = vrot.lane.b32.xlu0 %v1077, 32
        %v1977 = vpop.permute.xlu0 %1976
        %1978 = vrot.lane.b32.xlu0 %v1078, 32
        %v1979 = vpop.permute.xlu0 %1978
        %1980 = vrot.lane.b32.xlu0 %v1079, 32
        %v1981 = vpop.permute.xlu0 %1980
        %1982 = vrot.lane.b32.xlu0 %v1080, 32
        %v1983 = vpop.permute.xlu0 %1982
        %1984 = vrot.lane.b32.xlu0 %v1081, 32
        %v1985 = vpop.permute.xlu0 %1984
        %1986 = vrot.lane.b32.xlu0 %v1082, 32
        %v1987 = vpop.permute.xlu0 %1986
        %1988 = vrot.lane.b32.xlu0 %v1083, 32
        %v1989 = vpop.permute.xlu0 %1988
        %1990 = vrot.lane.b32.xlu0 %v1084, 32
        %v1991 = vpop.permute.xlu0 %1990
        %1992 = vrot.lane.b32.xlu0 %v1085, 32
        %v1993 = vpop.permute.xlu0 %1992
        %1994 = vrot.lane.b32.xlu0 %v1086, 32
        %v1995 = vpop.permute.xlu0 %1994
        %1996 = vrot.lane.b32.xlu0 %v1087, 32
        %v1997 = vpop.permute.xlu0 %1996
        %1998 = vrot.lane.b32.xlu0 %v1088, 32
        %v1999 = vpop.permute.xlu0 %1998
        %2000 = vrot.lane.b32.xlu0 %v1089, 32
        %v2001 = vpop.permute.xlu0 %2000
        %2002 = vrot.lane.b32.xlu0 %v1090, 32
        %v2003 = vpop.permute.xlu0 %2002
        %2004 = vrot.lane.b32.xlu0 %v1091, 32
        %v2005 = vpop.permute.xlu0 %2004
        %2006 = vrot.lane.b32.xlu0 %v1092, 32
        %v2007 = vpop.permute.xlu0 %2006
        %2008 = vrot.lane.b32.xlu0 %v1093, 32
        %v2009 = vpop.permute.xlu0 %2008
        %2010 = vrot.lane.b32.xlu0 %v1094, 32
        %v2011 = vpop.permute.xlu0 %2010
        %2012 = vrot.lane.b32.xlu0 %v1095, 32
        %v2013 = vpop.permute.xlu0 %2012
        %2014 = vrot.lane.b32.xlu0 %v1096, 32
        %v2015 = vpop.permute.xlu0 %2014
        %2016 = vrot.lane.b32.xlu0 %v1097, 32
        %v2017 = vpop.permute.xlu0 %2016
        %2018 = vrot.lane.b32.xlu0 %v1098, 32
        %v2019 = vpop.permute.xlu0 %2018
        %2020 = vrot.lane.b32.xlu0 %v1099, 32
        %v2021 = vpop.permute.xlu0 %2020
        %2022 = vrot.lane.b32.xlu0 %v1142, 32
        %v2023 = vpop.permute.xlu0 %2022
        %2024 = vrot.lane.b32.xlu0 %v1143, 32
        %v2025 = vpop.permute.xlu0 %2024
        %2026 = vrot.lane.b32.xlu0 %v1186, 32
        %v2027 = vpop.permute.xlu0 %2026
        %2028 = vrot.lane.b32.xlu0 %v1187, 32
        %v2029 = vpop.permute.xlu0 %2028
        %vm2062 = vcmask 31744
        %v2063 = vsel %vm2062, %v390, %v1221
        %v2064 = vsel %vm2062, %v391, %v1223
        %v2065 = vsel %vm2062, %v392, %v1225
        %v2066 = vsel %vm2062, %v393, %v1227
        %v2067 = vsel %vm2062, %v394, %v1229
        %v2068 = vsel %vm2062, %v395, %v1231
        %v2069 = vsel %vm2062, %v396, %v1233
        %v2070 = vsel %vm2062, %v397, %v1235
        %v2071 = vsel %vm2062, %v398, %v1237
        %v2072 = vsel %vm2062, %v399, %v1239
        %v2073 = vsel %vm2062, %v400, %v1241
        %v2074 = vsel %vm2062, %v401, %v1243
        %v2075 = vsel %vm2062, %v402, %v1245
        %v2076 = vsel %vm2062, %v403, %v1247
        %v2077 = vsel %vm2062, %v404, %v1249
        %v2078 = vsel %vm2062, %v405, %v1251
        %v2079 = vsel %vm2062, %v406, %v1253
        %v2080 = vsel %vm2062, %v407, %v1255
        %v2081 = vsel %vm2062, %v408, %v1257
        %v2082 = vsel %vm2062, %v409, %v1259
        %v2083 = vsel %vm2062, %v410, %v1261
        %v2084 = vsel %vm2062, %v411, %v1263
        %v2085 = vsel %vm2062, %v412, %v1265
        %v2086 = vsel %vm2062, %v413, %v1267
        %v2087 = vsel %vm2062, %v414, %v1269
        %v2088 = vsel %vm2062, %v415, %v1271
        %v2089 = vsel %vm2062, %v416, %v1273
        %v2090 = vsel %vm2062, %v417, %v1275
        %v2091 = vsel %vm2062, %v418, %v1277
        %v2092 = vsel %vm2062, %v419, %v1279
        %v2093 = vsel %vm2062, %v420, %v1281
        %v2094 = vsel %vm2062, %v421, %v1283
        %vm2095 = vcmask 64512
        %v2096 = vsel %vm2095, %v2063, %v1349
        %v2097 = vsel %vm2095, %v2064, %v1351
        %v2098 = vsel %vm2095, %v2065, %v1353
        %v2099 = vsel %vm2095, %v2066, %v1355
        %v2100 = vsel %vm2095, %v2067, %v1357
        %v2101 = vsel %vm2095, %v2068, %v1359
        %v2102 = vsel %vm2095, %v2069, %v1361
        %v2103 = vsel %vm2095, %v2070, %v1363
        %v2104 = vsel %vm2095, %v2071, %v1365
        %v2105 = vsel %vm2095, %v2072, %v1367
        %v2106 = vsel %vm2095, %v2073, %v1369
        %v2107 = vsel %vm2095, %v2074, %v1371
        %v2108 = vsel %vm2095, %v2075, %v1373
        %v2109 = vsel %vm2095, %v2076, %v1375
        %v2110 = vsel %vm2095, %v2077, %v1377
        %v2111 = vsel %vm2095, %v2078, %v1379
        %v2112 = vsel %vm2095, %v2079, %v1381
        %v2113 = vsel %vm2095, %v2080, %v1383
        %v2114 = vsel %vm2095, %v2081, %v1385
        %v2115 = vsel %vm2095, %v2082, %v1387
        %v2116 = vsel %vm2095, %v2083, %v1389
        %v2117 = vsel %vm2095, %v2084, %v1391
        %v2118 = vsel %vm2095, %v2085, %v1393
        %v2119 = vsel %vm2095, %v2086, %v1395
        %v2120 = vsel %vm2095, %v2087, %v1397
        %v2121 = vsel %vm2095, %v2088, %v1399
        %v2122 = vsel %vm2095, %v2089, %v1401
        %v2123 = vsel %vm2095, %v2090, %v1403
        %v2124 = vsel %vm2095, %v2091, %v1405
        %v2125 = vsel %vm2095, %v2092, %v1407
        %v2126 = vsel %vm2095, %v2093, %v1409
        %v2127 = vsel %vm2095, %v2094, %v1411
        %vm2128 = vcmask 97280
        %v2129 = vsel %vm2128, %v2096, %v1477
        %v2130 = vsel %vm2128, %v2097, %v1479
        %v2131 = vsel %vm2128, %v2098, %v1481
        %v2132 = vsel %vm2128, %v2099, %v1483
        %v2133 = vsel %vm2128, %v2100, %v1485
        %v2134 = vsel %vm2128, %v2101, %v1487
        %v2135 = vsel %vm2128, %v2102, %v1489
        %v2136 = vsel %vm2128, %v2103, %v1491
        %v2137 = vsel %vm2128, %v2104, %v1493
        %v2138 = vsel %vm2128, %v2105, %v1495
        %v2139 = vsel %vm2128, %v2106, %v1497
        %v2140 = vsel %vm2128, %v2107, %v1499
        %v2141 = vsel %vm2128, %v2108, %v1501
        %v2142 = vsel %vm2128, %v2109, %v1503
        %v2143 = vsel %vm2128, %v2110, %v1505
        %v2144 = vsel %vm2128, %v2111, %v1507
        %v2145 = vsel %vm2128, %v2112, %v1509
        %v2146 = vsel %vm2128, %v2113, %v1511
        %v2147 = vsel %vm2128, %v2114, %v1513
        %v2148 = vsel %vm2128, %v2115, %v1515
        %v2149 = vsel %vm2128, %v2116, %v1517
        %v2150 = vsel %vm2128, %v2117, %v1519
        %v2151 = vsel %vm2128, %v2118, %v1521
        %v2152 = vsel %vm2128, %v2119, %v1523
        %v2153 = vsel %vm2128, %v2120, %v1525
        %v2154 = vsel %vm2128, %v2121, %v1527
        %v2155 = vsel %vm2128, %v2122, %v1529
        %v2156 = vsel %vm2128, %v2123, %v1531
        %v2157 = vsel %vm2128, %v2124, %v1533
        %v2158 = vsel %vm2128, %v2125, %v1535
        %v2159 = vsel %vm2128, %v2126, %v1537
        %v2160 = vsel %vm2128, %v2127, %v1539
        %vm2161 = vcmask 130048
        %v2162 = vsel %vm2161, %v2129, %v1575
        %v2163 = vsel %vm2161, %v2130, %v1577
        %v2164 = vsel %vm2161, %v2131, %v1579
        %v2165 = vsel %vm2161, %v2132, %v1581
        %v2166 = vsel %vm2161, %v2133, %v1583
        %v2167 = vsel %vm2161, %v2134, %v1585
        %v2168 = vsel %vm2161, %v2135, %v1587
        %v2169 = vsel %vm2161, %v2136, %v1589
        %v2170 = vsel %vm2161, %v2137, %v1591
        %v2171 = vsel %vm2161, %v2138, %v1593
        %v2172 = vsel %vm2161, %v2139, %v1595
        %v2173 = vsel %vm2161, %v2140, %v1597
        %v2174 = vsel %vm2161, %v2141, %v1599
        %v2175 = vsel %vm2161, %v2142, %v1601
        %v2176 = vsel %vm2161, %v2143, %v1603
        %v2177 = vsel %vm2161, %v2144, %v1605
        %v2178 = vsel %vm2161, %v2145, %v1607
        %v2179 = vsel %vm2161, %v2146, %v1609
        %v2180 = vsel %vm2161, %v2147, %v1611
        %v2181 = vsel %vm2161, %v2148, %v1613
        %v2182 = vsel %vm2161, %v2149, %v1615
        %v2183 = vsel %vm2161, %v2150, %v1617
        %v2184 = vsel %vm2161, %v2151, %v1619
        %v2185 = vsel %vm2161, %v2152, %v1621
        %v2186 = vsel %vm2161, %v2153, %v1623
        %v2187 = vsel %vm2161, %v2154, %v1625
        %v2188 = vsel %vm2161, %v2155, %v1627
        %v2189 = vsel %vm2161, %v2156, %v1629
        %v2190 = vsel %vm2161, %v2157, %v1631
        %v2191 = vsel %vm2161, %v2158, %v1633
        %v2192 = vsel %vm2161, %v2159, %v1635
        %v2193 = vsel %vm2161, %v2160, %v1637
        %vm2194 = vcmask 162816
        %v2195 = vsel %vm2194, %v2162, %v1673
        %v2196 = vsel %vm2194, %v2163, %v1675
        %v2197 = vsel %vm2194, %v2164, %v1677
        %v2198 = vsel %vm2194, %v2165, %v1679
        %v2199 = vsel %vm2194, %v2166, %v1681
        %v2200 = vsel %vm2194, %v2167, %v1683
        %v2201 = vsel %vm2194, %v2168, %v1685
        %v2202 = vsel %vm2194, %v2169, %v1687
        %v2203 = vsel %vm2194, %v2170, %v1689
        %v2204 = vsel %vm2194, %v2171, %v1691
        %v2205 = vsel %vm2194, %v2172, %v1693
        %v2206 = vsel %vm2194, %v2173, %v1695
        %v2207 = vsel %vm2194, %v2174, %v1697
        %v2208 = vsel %vm2194, %v2175, %v1699
        %v2209 = vsel %vm2194, %v2176, %v1701
        %v2210 = vsel %vm2194, %v2177, %v1703
        %v2211 = vsel %vm2194, %v2178, %v1705
        %v2212 = vsel %vm2194, %v2179, %v1707
        %v2213 = vsel %vm2194, %v2180, %v1709
        %v2214 = vsel %vm2194, %v2181, %v1711
        %v2215 = vsel %vm2194, %v2182, %v1713
        %v2216 = vsel %vm2194, %v2183, %v1715
        %v2217 = vsel %vm2194, %v2184, %v1717
        %v2218 = vsel %vm2194, %v2185, %v1719
        %v2219 = vsel %vm2194, %v2186, %v1721
        %v2220 = vsel %vm2194, %v2187, %v1723
        %v2221 = vsel %vm2194, %v2188, %v1725
        %v2222 = vsel %vm2194, %v2189, %v1727
        %v2223 = vsel %vm2194, %v2190, %v1729
        %v2224 = vsel %vm2194, %v2191, %v1731
        %v2225 = vsel %vm2194, %v2192, %v1733
        %v2226 = vsel %vm2194, %v2193, %v1735
        %vm2227 = vcmask 195584
        %v2228 = vsel %vm2227, %v2195, %v1771
        %v2229 = vsel %vm2227, %v2196, %v1773
        %v2230 = vsel %vm2227, %v2197, %v1775
        %v2231 = vsel %vm2227, %v2198, %v1777
        %v2232 = vsel %vm2227, %v2199, %v1779
        %v2233 = vsel %vm2227, %v2200, %v1781
        %v2234 = vsel %vm2227, %v2201, %v1783
        %v2235 = vsel %vm2227, %v2202, %v1785
        %v2236 = vsel %vm2227, %v2203, %v1787
        %v2237 = vsel %vm2227, %v2204, %v1789
        %v2238 = vsel %vm2227, %v2205, %v1791
        %v2239 = vsel %vm2227, %v2206, %v1793
        %v2240 = vsel %vm2227, %v2207, %v1795
        %v2241 = vsel %vm2227, %v2208, %v1797
        %v2242 = vsel %vm2227, %v2209, %v1799
        %v2243 = vsel %vm2227, %v2210, %v1801
        %v2244 = vsel %vm2227, %v2211, %v1803
        %v2245 = vsel %vm2227, %v2212, %v1805
        %v2246 = vsel %vm2227, %v2213, %v1807
        %v2247 = vsel %vm2227, %v2214, %v1809
        %v2248 = vsel %vm2227, %v2215, %v1811
        %v2249 = vsel %vm2227, %v2216, %v1813
        %v2250 = vsel %vm2227, %v2217, %v1815
        %v2251 = vsel %vm2227, %v2218, %v1817
        %v2252 = vsel %vm2227, %v2219, %v1819
        %v2253 = vsel %vm2227, %v2220, %v1821
        %v2254 = vsel %vm2227, %v2221, %v1823
        %v2255 = vsel %vm2227, %v2222, %v1825
        %v2256 = vsel %vm2227, %v2223, %v1827
        %v2257 = vsel %vm2227, %v2224, %v1829
        %v2258 = vsel %vm2227, %v2225, %v1831
        %v2259 = vsel %vm2227, %v2226, %v1833
        %vm2260 = vcmask 228352
        %v2261 = vsel %vm2260, %v2228, %v1869
        %v2262 = vsel %vm2260, %v2229, %v1871
        %v2263 = vsel %vm2260, %v2230, %v1873
        %v2264 = vsel %vm2260, %v2231, %v1875
        %v2265 = vsel %vm2260, %v2232, %v1877
        %v2266 = vsel %vm2260, %v2233, %v1879
        %v2267 = vsel %vm2260, %v2234, %v1881
        %v2268 = vsel %vm2260, %v2235, %v1883
        %v2269 = vsel %vm2260, %v2236, %v1885
        %v2270 = vsel %vm2260, %v2237, %v1887
        %v2271 = vsel %vm2260, %v2238, %v1889
        %v2272 = vsel %vm2260, %v2239, %v1891
        %v2273 = vsel %vm2260, %v2240, %v1893
        %v2274 = vsel %vm2260, %v2241, %v1895
        %v2275 = vsel %vm2260, %v2242, %v1897
        %v2276 = vsel %vm2260, %v2243, %v1899
        %v2277 = vsel %vm2260, %v2244, %v1901
        %v2278 = vsel %vm2260, %v2245, %v1903
        %v2279 = vsel %vm2260, %v2246, %v1905
        %v2280 = vsel %vm2260, %v2247, %v1907
        %v2281 = vsel %vm2260, %v2248, %v1909
        %v2282 = vsel %vm2260, %v2249, %v1911
        %v2283 = vsel %vm2260, %v2250, %v1913
        %v2284 = vsel %vm2260, %v2251, %v1915
        %v2285 = vsel %vm2260, %v2252, %v1917
        %v2286 = vsel %vm2260, %v2253, %v1919
        %v2287 = vsel %vm2260, %v2254, %v1921
        %v2288 = vsel %vm2260, %v2255, %v1923
        %v2289 = vsel %vm2260, %v2256, %v1925
        %v2290 = vsel %vm2260, %v2257, %v1927
        %v2291 = vsel %vm2260, %v2258, %v1929
        %v2292 = vsel %vm2260, %v2259, %v1931
        %vm2293 = vcmask 261120
        %v2294 = vsel %vm2293, %v2261, %v1967
        %v2295 = vsel %vm2293, %v2262, %v1969
        %v2296 = vsel %vm2293, %v2263, %v1971
        %v2297 = vsel %vm2293, %v2264, %v1973
        %v2298 = vsel %vm2293, %v2265, %v1975
        %v2299 = vsel %vm2293, %v2266, %v1977
        %v2300 = vsel %vm2293, %v2267, %v1979
        %v2301 = vsel %vm2293, %v2268, %v1981
        %v2302 = vsel %vm2293, %v2269, %v1983
        %v2303 = vsel %vm2293, %v2270, %v1985
        %v2304 = vsel %vm2293, %v2271, %v1987
        %v2305 = vsel %vm2293, %v2272, %v1989
        %v2306 = vsel %vm2293, %v2273, %v1991
        %v2307 = vsel %vm2293, %v2274, %v1993
        %v2308 = vsel %vm2293, %v2275, %v1995
        %v2309 = vsel %vm2293, %v2276, %v1997
        %v2310 = vsel %vm2293, %v2277, %v1999
        %v2311 = vsel %vm2293, %v2278, %v2001
        %v2312 = vsel %vm2293, %v2279, %v2003
        %v2313 = vsel %vm2293, %v2280, %v2005
        %v2314 = vsel %vm2293, %v2281, %v2007
        %v2315 = vsel %vm2293, %v2282, %v2009
        %v2316 = vsel %vm2293, %v2283, %v2011
        %v2317 = vsel %vm2293, %v2284, %v2013
        %v2318 = vsel %vm2293, %v2285, %v2015
        %v2319 = vsel %vm2293, %v2286, %v2017
        %v2320 = vsel %vm2293, %v2287, %v2019
        %v2321 = vsel %vm2293, %v2288, %v2021
        %v2322 = vsel %vm2293, %v2289, %v2023
        %v2323 = vsel %vm2293, %v2290, %v2025
        %v2324 = vsel %vm2293, %v2291, %v2027
        %v2325 = vsel %vm2293, %v2292, %v2029
        %v2326 = vpack.c.bf16 %v2295, %v2294
        %v2327 = vpack.c.bf16 %v2297, %v2296
        %v2328 = vpack.c.bf16 %v2299, %v2298
        %v2329 = vpack.c.bf16 %v2301, %v2300
        %v2330 = vpack.c.bf16 %v2303, %v2302
        %v2331 = vpack.c.bf16 %v2305, %v2304
        %v2332 = vpack.c.bf16 %v2307, %v2306
        %v2333 = vpack.c.bf16 %v2309, %v2308
        %v2334 = vpack.c.bf16 %v2311, %v2310
        %v2335 = vpack.c.bf16 %v2313, %v2312
        %v2336 = vpack.c.bf16 %v2315, %v2314
        %v2337 = vpack.c.bf16 %v2317, %v2316
        %v2338 = vpack.c.bf16 %v2319, %v2318
        %v2339 = vpack.c.bf16 %v2321, %v2320
        %v2340 = vpack.c.bf16 %v2323, %v2322
        %v2341 = vpack.c.bf16 %v2325, %v2324
        %v2342 = vld [vmem:[%s333] sm:$0xf]
        %v2343 = vld [vmem:[%s333 + $0x4] sm:$0xf]
        %v2344 = vld [vmem:[%s333 + $0x8] sm:$0xf]
        %v2345 = vld [vmem:[%s333 + $0xc] sm:$0xf]
        %v2346 = vld [vmem:[%s333 + $0x10] sm:$0x3]
        %v2352 = vunpack.c.l.b16 %v2342
        %v2353 = vunpack.c.l.b16 %v2343
        %v2354 = vunpack.c.l.b16 %v2344
        %v2355 = vunpack.c.l.b16 %v2345
        %v2356 = vunpack.c.l.b16 %v2346
        %v2357 = vpack.c.b16 %v2353, %v2352
        %v2358 = vpack.c.b16 %v2355, %v2354
        %v2359 = vpack.c.b16 %v2356, %v2356
        %vm2362 = vcmask 293888
        %v2364 = vsel %vm2362, %v2326, 0
        %v2367 = vsel %vm2362, %v2327, 0
        %v2370 = vsel %vm2362, %v2328, 0
        %v2373 = vsel %vm2362, %v2329, 0
        %v2376 = vsel %vm2362, %v2330, 0
        %v2379 = vsel %vm2362, %v2331, 0
        %v2382 = vsel %vm2362, %v2332, 0
        %v2385 = vsel %vm2362, %v2333, 0
        %v2388 = vsel %vm2362, %v2334, 0
        %v2391 = vsel %vm2362, %v2335, 0
        %v2394 = vsel %vm2362, %v2336, 0
        %v2397 = vsel %vm2362, %v2337, 0
        %v2400 = vsel %vm2362, %v2338, 0
        %v2403 = vsel %vm2362, %v2339, 0
        %v2406 = vsel %vm2362, %v2340, 0
        %v2409 = vsel %vm2362, %v2341, 0
        %vm2411 = vcmask 1041408
        %v2413 = vsel %vm2411, %v2359, 0
        %2415 = vmatprep.subr.bf16.mxu0 0
        %2416 = vmatpush1.bf16.msra.mxu0 0
        %2417 = vmatprep.subr.bf16.mxu0 0
        %2418 = vmatpush1.bf16.msra.mxu0 0
        %2419 = vmatprep.subr.bf16.mxu0 0
        %2420 = vmatpush1.bf16.msra.mxu0 0
        %2421 = vmatprep.subr.bf16.mxu0 0
        %2422 = vmatpush1.bf16.msra.mxu0 0
        %2423 = vmatprep.subr.bf16.mxu0 0
        %2424 = vmatpush1.bf16.msra.mxu0 0
        %2425 = vmatprep.subr.bf16.mxu0 0
        %2426 = vmatpush1.bf16.msra.mxu0 %v2413
        %2427 = vmatprep.subr.bf16.mxu0 0
        %2428 = vmatpush1.bf16.msra.mxu0 %v2358
        %2429 = vmatprep.subr.bf16.mxu0 0
        %2430 = vmatpush1.bf16.msra.mxu0 %v2357
        %2431 = vmatprep.subr.bf16.mxu0 0
        %2432 = vmatpush2.bf16.msra.mxu0 0
        %2433 = vmatprep.subr.bf16.mxu0 0
        %2434 = vmatpush2.bf16.msra.mxu0 0
        %2435 = vmatprep.subr.bf16.mxu0 0
        %2436 = vmatpush2.bf16.msra.mxu0 0
        %2437 = vmatprep.subr.bf16.mxu0 0
        %2438 = vmatpush2.bf16.msra.mxu0 0
        %2439 = vmatprep.subr.bf16.mxu0 0
        %2440 = vmatpush2.bf16.msra.mxu0 0
        %2441 = vmatprep.subr.bf16.mxu0 0
        %2442 = vmatpush2.bf16.msra.mxu0 0
        %2443 = vmatprep.subr.bf16.mxu0 0
        %2444 = vmatpush2.bf16.msra.mxu0 0
        %2445 = vmatprep.subr.bf16.mxu0 0
        %2446 = vmatpush2.bf16.msra.mxu0 0
        %2447 = vmatprep.mubr.bf16.mxu0 0
        %2448 = vmatmul.mubr.bf16.gmra.mxu0 %v2364
        %v2449 = vpop.f32.mrf.mxu0
        %v2450 = vadd.f32 0.0, %v2449
        %v2451 = vpop.f32.mrf.mxu0
        %v2452 = vpop.f32.mrf.mxu0
        %v2453 = vadd.f32 0.0, %v2452
        %v2454 = vpop.f32.mrf.mxu0
        %2455 = vmatprep.mubr.bf16.mxu0 0
        %2456 = vmatmul.mubr.bf16.gmra.mxu0 %v2367
        %v2457 = vpop.f32.mrf.mxu0
        %v2458 = vadd.f32 0.0, %v2457
        %v2459 = vpop.f32.mrf.mxu0
        %v2460 = vpop.f32.mrf.mxu0
        %v2461 = vadd.f32 0.0, %v2460
        %v2462 = vpop.f32.mrf.mxu0
        %2463 = vmatprep.mubr.bf16.mxu0 0
        %2464 = vmatmul.mubr.bf16.gmra.mxu0 %v2370
        %v2465 = vpop.f32.mrf.mxu0
        %v2466 = vadd.f32 0.0, %v2465
        %v2467 = vpop.f32.mrf.mxu0
        %v2468 = vpop.f32.mrf.mxu0
        %v2469 = vadd.f32 0.0, %v2468
        %v2470 = vpop.f32.mrf.mxu0
        %2471 = vmatprep.mubr.bf16.mxu0 0
        %2472 = vmatmul.mubr.bf16.gmra.mxu0 %v2373
        %v2473 = vpop.f32.mrf.mxu0
        %v2474 = vadd.f32 0.0, %v2473
        %v2475 = vpop.f32.mrf.mxu0
        %v2476 = vpop.f32.mrf.mxu0
        %v2477 = vadd.f32 0.0, %v2476
        %v2478 = vpop.f32.mrf.mxu0
        %2479 = vmatprep.mubr.bf16.mxu0 0
        %2480 = vmatmul.mubr.bf16.gmra.mxu0 %v2376
        %v2481 = vpop.f32.mrf.mxu0
        %v2482 = vadd.f32 0.0, %v2481
        %v2483 = vpop.f32.mrf.mxu0
        %v2484 = vpop.f32.mrf.mxu0
        %v2485 = vadd.f32 0.0, %v2484
        %v2486 = vpop.f32.mrf.mxu0
        %2487 = vmatprep.mubr.bf16.mxu0 0
        %2488 = vmatmul.mubr.bf16.gmra.mxu0 %v2379
        %v2489 = vpop.f32.mrf.mxu0
        %v2490 = vadd.f32 0.0, %v2489
        %v2491 = vpop.f32.mrf.mxu0
        %v2492 = vpop.f32.mrf.mxu0
        %v2493 = vadd.f32 0.0, %v2492
        %v2494 = vpop.f32.mrf.mxu0
        %2495 = vmatprep.mubr.bf16.mxu0 0
        %2496 = vmatmul.mubr.bf16.gmra.mxu0 %v2382
        %v2497 = vpop.f32.mrf.mxu0
        %v2498 = vadd.f32 0.0, %v2497
        %v2499 = vpop.f32.mrf.mxu0
        %v2500 = vpop.f32.mrf.mxu0
        %v2501 = vadd.f32 0.0, %v2500
        %v2502 = vpop.f32.mrf.mxu0
        %2503 = vmatprep.mubr.bf16.mxu0 0
        %2504 = vmatmul.mubr.bf16.gmra.mxu0 %v2385
        %v2505 = vpop.f32.mrf.mxu0
        %v2506 = vadd.f32 0.0, %v2505
        %v2507 = vpop.f32.mrf.mxu0
        %v2508 = vpop.f32.mrf.mxu0
        %v2509 = vadd.f32 0.0, %v2508
        %v2510 = vpop.f32.mrf.mxu0
        %2511 = vmatprep.mubr.bf16.mxu0 0
        %2512 = vmatmul.mubr.bf16.gmra.mxu0 %v2388
        %v2513 = vpop.f32.mrf.mxu0
        %v2514 = vadd.f32 0.0, %v2513
        %v2515 = vpop.f32.mrf.mxu0
        %v2516 = vpop.f32.mrf.mxu0
        %v2517 = vadd.f32 0.0, %v2516
        %v2518 = vpop.f32.mrf.mxu0
        %2519 = vmatprep.mubr.bf16.mxu0 0
        %2520 = vmatmul.mubr.bf16.gmra.mxu0 %v2391
        %v2521 = vpop.f32.mrf.mxu0
        %v2522 = vadd.f32 0.0, %v2521
        %v2523 = vpop.f32.mrf.mxu0
        %v2524 = vpop.f32.mrf.mxu0
        %v2525 = vadd.f32 0.0, %v2524
        %v2526 = vpop.f32.mrf.mxu0
        %2527 = vmatprep.mubr.bf16.mxu0 0
        %2528 = vmatmul.mubr.bf16.gmra.mxu0 %v2394
        %v2529 = vpop.f32.mrf.mxu0
        %v2530 = vadd.f32 0.0, %v2529
        %v2531 = vpop.f32.mrf.mxu0
        %v2532 = vpop.f32.mrf.mxu0
        %v2533 = vadd.f32 0.0, %v2532
        %v2534 = vpop.f32.mrf.mxu0
        %2535 = vmatprep.mubr.bf16.mxu0 0
        %2536 = vmatmul.mubr.bf16.gmra.mxu0 %v2397
        %v2537 = vpop.f32.mrf.mxu0
        %v2538 = vadd.f32 0.0, %v2537
        %v2539 = vpop.f32.mrf.mxu0
        %v2540 = vpop.f32.mrf.mxu0
        %v2541 = vadd.f32 0.0, %v2540
        %v2542 = vpop.f32.mrf.mxu0
        %2543 = vmatprep.mubr.bf16.mxu0 0
        %2544 = vmatmul.mubr.bf16.gmra.mxu0 %v2400
        %v2545 = vpop.f32.mrf.mxu0
        %v2546 = vadd.f32 0.0, %v2545
        %v2547 = vpop.f32.mrf.mxu0
        %v2548 = vpop.f32.mrf.mxu0
        %v2549 = vadd.f32 0.0, %v2548
        %v2550 = vpop.f32.mrf.mxu0
        %2551 = vmatprep.mubr.bf16.mxu0 0
        %2552 = vmatmul.mubr.bf16.gmra.mxu0 %v2403
        %v2553 = vpop.f32.mrf.mxu0
        %v2554 = vadd.f32 0.0, %v2553
        %v2555 = vpop.f32.mrf.mxu0
        %v2556 = vpop.f32.mrf.mxu0
        %v2557 = vadd.f32 0.0, %v2556
        %v2558 = vpop.f32.mrf.mxu0
        %2559 = vmatprep.mubr.bf16.mxu0 0
        %2560 = vmatmul.mubr.bf16.gmra.mxu0 %v2406
        %v2561 = vpop.f32.mrf.mxu0
        %v2562 = vadd.f32 0.0, %v2561
        %v2563 = vpop.f32.mrf.mxu0
        %v2564 = vpop.f32.mrf.mxu0
        %v2565 = vadd.f32 0.0, %v2564
        %v2566 = vpop.f32.mrf.mxu0
        %2567 = vmatprep.mubr.bf16.mxu0 0
        %2568 = vmatmul.mubr.bf16.gmra.mxu0 %v2409
        %v2569 = vpop.f32.mrf.mxu0
        %v2570 = vadd.f32 0.0, %v2569
        %v2571 = vpop.f32.mrf.mxu0
        %v2572 = vpop.f32.mrf.mxu0
        %v2573 = vadd.f32 0.0, %v2572
        %v2574 = vpop.f32.mrf.mxu0
        %2575 = vdwg.mxu0
        %v2576 = vpack.c.bf16 %v2453, %v2450
        %v2577 = vpack.c.bf16 %v2461, %v2458
        %v2578 = vpack.c.bf16 %v2469, %v2466
        %v2579 = vpack.c.bf16 %v2477, %v2474
        %v2580 = vpack.c.bf16 %v2485, %v2482
        %v2581 = vpack.c.bf16 %v2493, %v2490
        %v2582 = vpack.c.bf16 %v2501, %v2498
        %v2583 = vpack.c.bf16 %v2509, %v2506
        %v2584 = vpack.c.bf16 %v2517, %v2514
        %v2585 = vpack.c.bf16 %v2525, %v2522
        %v2586 = vpack.c.bf16 %v2533, %v2530
        %v2587 = vpack.c.bf16 %v2541, %v2538
        %v2588 = vpack.c.bf16 %v2549, %v2546
        %v2589 = vpack.c.bf16 %v2557, %v2554
        %v2590 = vpack.c.bf16 %v2565, %v2562
        %v2591 = vpack.c.bf16 %v2573, %v2570
        %v2608 = vunpack.c.l.b16 %v2576
        %v2609 = vunpack.c.h.b16 %v2576
        %v2610 = vunpack.c.l.b16 %v2577
        %v2611 = vunpack.c.h.b16 %v2577
        %v2612 = vunpack.c.l.b16 %v2578
        %v2613 = vunpack.c.h.b16 %v2578
        %v2614 = vunpack.c.l.b16 %v2579
        %v2615 = vunpack.c.h.b16 %v2579
        %v2616 = vunpack.c.l.b16 %v2580
        %v2617 = vunpack.c.h.b16 %v2580
        %v2618 = vunpack.c.l.b16 %v2581
        %v2619 = vunpack.c.h.b16 %v2581
        %v2620 = vunpack.c.l.b16 %v2582
        %v2621 = vunpack.c.h.b16 %v2582
        %v2622 = vunpack.c.l.b16 %v2583
        %v2623 = vunpack.c.h.b16 %v2583
        %v2624 = vunpack.c.l.b16 %v2584
        %v2625 = vunpack.c.h.b16 %v2584
        %v2626 = vunpack.c.l.b16 %v2585
        %v2627 = vunpack.c.h.b16 %v2585
        %v2628 = vunpack.c.l.b16 %v2586
        %v2629 = vunpack.c.h.b16 %v2586
        %v2630 = vunpack.c.l.b16 %v2587
        %v2631 = vunpack.c.h.b16 %v2587
        %v2632 = vunpack.c.l.b16 %v2588
        %v2633 = vunpack.c.h.b16 %v2588
        %v2634 = vunpack.c.l.b16 %v2589
        %v2635 = vunpack.c.h.b16 %v2589
        %v2636 = vunpack.c.l.b16 %v2590
        %v2637 = vunpack.c.h.b16 %v2590
        %v2638 = vunpack.c.l.b16 %v2591
        %v2639 = vunpack.c.h.b16 %v2591
        %v2640 = vpack.c.b16 %v2608, %v2608
        %v2641 = vpack.c.b16 %v2609, %v2609
        %v2642 = vpack.c.b16 %v2610, %v2610
        %v2643 = vpack.c.b16 %v2611, %v2611
        %v2644 = vpack.c.b16 %v2612, %v2612
        %v2645 = vpack.c.b16 %v2613, %v2613
        %v2646 = vpack.c.b16 %v2614, %v2614
        %v2647 = vpack.c.b16 %v2615, %v2615
        %v2648 = vpack.c.b16 %v2616, %v2616
        %v2649 = vpack.c.b16 %v2617, %v2617
        %v2650 = vpack.c.b16 %v2618, %v2618
        %v2651 = vpack.c.b16 %v2619, %v2619
        %v2652 = vpack.c.b16 %v2620, %v2620
        %v2653 = vpack.c.b16 %v2621, %v2621
        %v2654 = vpack.c.b16 %v2622, %v2622
        %v2655 = vpack.c.b16 %v2623, %v2623
        %v2656 = vpack.c.b16 %v2624, %v2624
        %v2657 = vpack.c.b16 %v2625, %v2625
        %v2658 = vpack.c.b16 %v2626, %v2626
        %v2659 = vpack.c.b16 %v2627, %v2627
        %v2660 = vpack.c.b16 %v2628, %v2628
        %v2661 = vpack.c.b16 %v2629, %v2629
        %v2662 = vpack.c.b16 %v2630, %v2630
        %v2663 = vpack.c.b16 %v2631, %v2631
        %v2664 = vpack.c.b16 %v2632, %v2632
        %v2665 = vpack.c.b16 %v2633, %v2633
        %v2666 = vpack.c.b16 %v2634, %v2634
        %v2667 = vpack.c.b16 %v2635, %v2635
        %v2668 = vpack.c.b16 %v2636, %v2636
        %v2669 = vpack.c.b16 %v2637, %v2637
        %v2670 = vpack.c.b16 %v2638, %v2638
        %v2671 = vpack.c.b16 %v2639, %v2639
        %2704 = vst [vmem:[%s290] sm:$0xf] %v2640
        %2705 = vst [vmem:[%s290 + $0x4] sm:$0xf] %v2641
        %2706 = vst [vmem:[%s290 + $0x8] sm:$0xf] %v2642
        %2707 = vst [vmem:[%s290 + $0xc] sm:$0xf] %v2643
        %2708 = vst [vmem:[%s290 + $0x10] sm:$0xf] %v2644
        %2709 = vst [vmem:[%s290 + $0x14] sm:$0xf] %v2645
        %2710 = vst [vmem:[%s290 + $0x18] sm:$0xf] %v2646
        %2711 = vst [vmem:[%s290 + $0x1c] sm:$0xf] %v2647
        %2712 = vst [vmem:[%s290 + $0x20] sm:$0xf] %v2648
        %2713 = vst [vmem:[%s290 + $0x24] sm:$0xf] %v2649
        %2714 = vst [vmem:[%s290 + $0x28] sm:$0xf] %v2650
        %2715 = vst [vmem:[%s290 + $0x2c] sm:$0xf] %v2651
        %2716 = vst [vmem:[%s290 + $0x30] sm:$0xf] %v2652
        %2717 = vst [vmem:[%s290 + $0x34] sm:$0xf] %v2653
        %2718 = vst [vmem:[%s290 + $0x38] sm:$0xf] %v2654
        %2719 = vst [vmem:[%s290 + $0x3c] sm:$0xf] %v2655
        %2720 = vst [vmem:[%s290 + $0x40] sm:$0xf] %v2656
        %2721 = vst [vmem:[%s290 + $0x44] sm:$0xf] %v2657
        %2722 = vst [vmem:[%s290 + $0x48] sm:$0xf] %v2658
        %2723 = vst [vmem:[%s290 + $0x4c] sm:$0xf] %v2659
        %2724 = vst [vmem:[%s290 + $0x50] sm:$0xf] %v2660
        %2725 = vst [vmem:[%s290 + $0x54] sm:$0xf] %v2661
        %2726 = vst [vmem:[%s290 + $0x58] sm:$0xf] %v2662
        %2727 = vst [vmem:[%s290 + $0x5c] sm:$0xf] %v2663
        %2728 = vst [vmem:[%s290 + $0x60] sm:$0xf] %v2664
        %2729 = vst [vmem:[%s290 + $0x64] sm:$0xf] %v2665
        %2730 = vst [vmem:[%s290 + $0x68] sm:$0xf] %v2666
        %2731 = vst [vmem:[%s290 + $0x6c] sm:$0xf] %v2667
        %2732 = vst [vmem:[%s290 + $0x70] sm:$0xf] %v2668
        %2733 = vst [vmem:[%s290 + $0x74] sm:$0xf] %v2669
        %2734 = vst [vmem:[%s290 + $0x78] sm:$0xf] %v2670
        %2735 = vst [vmem:[%s290 + $0x7c] sm:$0xf] %v2671
        %v2736 = vadd.f32 %v2450, %v2453
        %v2737 = vadd.f32 %v2736, %v2458
        %v2738 = vadd.f32 %v2737, %v2461
        %v2739 = vadd.f32 %v2738, %v2466
        %v2740 = vadd.f32 %v2739, %v2469
        %v2741 = vadd.f32 %v2740, %v2474
        %v2742 = vadd.f32 %v2741, %v2477
        %v2743 = vadd.f32 %v2742, %v2482
        %v2744 = vadd.f32 %v2743, %v2485
        %v2745 = vadd.f32 %v2744, %v2490
        %v2746 = vadd.f32 %v2745, %v2493
        %v2747 = vadd.f32 %v2746, %v2498
        %v2748 = vadd.f32 %v2747, %v2501
        %v2749 = vadd.f32 %v2748, %v2506
        %v2750 = vadd.f32 %v2749, %v2509
        %v2751 = vadd.f32 %v2750, %v2514
        %v2752 = vadd.f32 %v2751, %v2517
        %v2753 = vadd.f32 %v2752, %v2522
        %v2754 = vadd.f32 %v2753, %v2525
        %v2755 = vadd.f32 %v2754, %v2530
        %v2756 = vadd.f32 %v2755, %v2533
        %v2757 = vadd.f32 %v2756, %v2538
        %v2758 = vadd.f32 %v2757, %v2541
        %v2759 = vadd.f32 %v2758, %v2546
        %v2760 = vadd.f32 %v2759, %v2549
        %v2761 = vadd.f32 %v2760, %v2554
        %v2762 = vadd.f32 %v2761, %v2557
        %v2763 = vadd.f32 %v2762, %v2562
        %v2764 = vadd.f32 %v2763, %v2565
        %v2765 = vadd.f32 %v2764, %v2570
        %v2766 = vadd.f32 %v2765, %v2573
        %v2767 = vrot.slane %v2766, 4
        %v2768 = vadd.f32 %v2766, %v2767
        %v2769 = vrot.slane %v2768, 2
        %v2770 = vadd.f32 %v2768, %v2769
        %v2771 = vrot.slane %v2770, 1
        %v2772 = vadd.f32 %v2770, %v2771
        %v2773 = vmul.f32 %v2772, 0.00390625
        %v2774 = vsub.f32 %v2450, %v2773
        %v2775 = vsub.f32 %v2453, %v2773
        %v2776 = vsub.f32 %v2458, %v2773
        %v2777 = vsub.f32 %v2461, %v2773
        %v2778 = vsub.f32 %v2466, %v2773
        %v2779 = vsub.f32 %v2469, %v2773
        %v2780 = vsub.f32 %v2474, %v2773
        %v2781 = vsub.f32 %v2477, %v2773
        %v2782 = vsub.f32 %v2482, %v2773
        %v2783 = vsub.f32 %v2485, %v2773
        %v2784 = vsub.f32 %v2490, %v2773
        %v2785 = vsub.f32 %v2493, %v2773
        %v2786 = vsub.f32 %v2498, %v2773
        %v2787 = vsub.f32 %v2501, %v2773
        %v2788 = vsub.f32 %v2506, %v2773
        %v2789 = vsub.f32 %v2509, %v2773
        %v2790 = vsub.f32 %v2514, %v2773
        %v2791 = vsub.f32 %v2517, %v2773
        %v2792 = vsub.f32 %v2522, %v2773
        %v2793 = vsub.f32 %v2525, %v2773
        %v2794 = vsub.f32 %v2530, %v2773
        %v2795 = vsub.f32 %v2533, %v2773
        %v2796 = vsub.f32 %v2538, %v2773
        %v2797 = vsub.f32 %v2541, %v2773
        %v2798 = vsub.f32 %v2546, %v2773
        %v2799 = vsub.f32 %v2549, %v2773
        %v2800 = vsub.f32 %v2554, %v2773
        %v2801 = vsub.f32 %v2557, %v2773
        %v2802 = vsub.f32 %v2562, %v2773
        %v2803 = vsub.f32 %v2565, %v2773
        %v2804 = vsub.f32 %v2570, %v2773
        %v2805 = vsub.f32 %v2573, %v2773
        %v2806 = vmul.f32 %v2774, %v2774
        %v2807 = vmul.f32 %v2775, %v2775
        %v2808 = vmul.f32 %v2776, %v2776
        %v2809 = vmul.f32 %v2777, %v2777
        %v2810 = vmul.f32 %v2778, %v2778
        %v2811 = vmul.f32 %v2779, %v2779
        %v2812 = vmul.f32 %v2780, %v2780
        %v2813 = vmul.f32 %v2781, %v2781
        %v2814 = vmul.f32 %v2782, %v2782
        %v2815 = vmul.f32 %v2783, %v2783
        %v2816 = vmul.f32 %v2784, %v2784
        %v2817 = vmul.f32 %v2785, %v2785
        %v2818 = vmul.f32 %v2786, %v2786
        %v2819 = vmul.f32 %v2787, %v2787
        %v2820 = vmul.f32 %v2788, %v2788
        %v2821 = vmul.f32 %v2789, %v2789
        %v2822 = vmul.f32 %v2790, %v2790
        %v2823 = vmul.f32 %v2791, %v2791
        %v2824 = vmul.f32 %v2792, %v2792
        %v2825 = vmul.f32 %v2793, %v2793
        %v2826 = vmul.f32 %v2794, %v2794
        %v2827 = vmul.f32 %v2795, %v2795
        %v2828 = vmul.f32 %v2796, %v2796
        %v2829 = vmul.f32 %v2797, %v2797
        %v2830 = vmul.f32 %v2798, %v2798
        %v2831 = vmul.f32 %v2799, %v2799
        %v2832 = vmul.f32 %v2800, %v2800
        %v2833 = vmul.f32 %v2801, %v2801
        %v2834 = vmul.f32 %v2802, %v2802
        %v2835 = vmul.f32 %v2803, %v2803
        %v2836 = vmul.f32 %v2804, %v2804
        %v2837 = vmul.f32 %v2805, %v2805
        %v2838 = vadd.f32 %v2806, %v2807
        %v2839 = vadd.f32 %v2838, %v2808
        %v2840 = vadd.f32 %v2839, %v2809
        %v2841 = vadd.f32 %v2840, %v2810
        %v2842 = vadd.f32 %v2841, %v2811
        %v2843 = vadd.f32 %v2842, %v2812
        %v2844 = vadd.f32 %v2843, %v2813
        %v2845 = vadd.f32 %v2844, %v2814
        %v2846 = vadd.f32 %v2845, %v2815
        %v2847 = vadd.f32 %v2846, %v2816
        %v2848 = vadd.f32 %v2847, %v2817
        %v2849 = vadd.f32 %v2848, %v2818
        %v2850 = vadd.f32 %v2849, %v2819
        %v2851 = vadd.f32 %v2850, %v2820
        %v2852 = vadd.f32 %v2851, %v2821
        %v2853 = vadd.f32 %v2852, %v2822
        %v2854 = vadd.f32 %v2853, %v2823
        %v2855 = vadd.f32 %v2854, %v2824
        %v2856 = vadd.f32 %v2855, %v2825
        %v2857 = vadd.f32 %v2856, %v2826
        %v2858 = vadd.f32 %v2857, %v2827
        %v2859 = vadd.f32 %v2858, %v2828
        %v2860 = vadd.f32 %v2859, %v2829
        %v2861 = vadd.f32 %v2860, %v2830
        %v2862 = vadd.f32 %v2861, %v2831
        %v2863 = vadd.f32 %v2862, %v2832
        %v2864 = vadd.f32 %v2863, %v2833
        %v2865 = vadd.f32 %v2864, %v2834
        %v2866 = vadd.f32 %v2865, %v2835
        %v2867 = vadd.f32 %v2866, %v2836
        %v2868 = vadd.f32 %v2867, %v2837
        %v2869 = vrot.slane %v2868, 4
        %v2870 = vadd.f32 %v2868, %v2869
        %v2871 = vrot.slane %v2870, 2
        %v2872 = vadd.f32 %v2870, %v2871
        %v2873 = vrot.slane %v2872, 1
        %v2874 = vadd.f32 %v2872, %v2873
        %vm2875 = vcmask 1040384
        %v2876 = vsel %vm2875, %v2772, %v2874
        %2877 = vst [vmem:[%s297] sm:$0x3] %v2876
        %s2878 = sand.u32 %s135, 1
        %s2879 = scalar_lea.sflag [#allocation3], %s2878
        %s2880 = sand.u32 %s135, 1
        %s2881 = smul.addr %s2880, 128
        %s2882 = scalar_lea.vmem [#allocation2], %s2881
        %s2883 = sand.u32 %s165, 1
        %s2884 = scalar_lea.sflag [#allocation5], %s2883
        %s2885 = sand.u32 %s165, 1
        %s2886 = smul.addr %s2885, 2
        %s2887 = scalar_lea.vmem [#allocation4], %s2886
        // Predicated region
        $region33: #{tpu_custom_call.1} parent=31 // pred_check
          %p2888 = pneg %p145
        $region34: #{tpu_custom_call.1} parent=31 // pred_check_branch
          %2890 = sbr.rel (%p2888) target = $region36
        $region35: #{tpu_custom_call.1} parent=31 // pred_region
          %s2891 = smul.u32 32, %s28
          %s2893 = ssub.s32 2048, 2048
          %2894 = vsyncadd %s2879, %s2893
          %s2895 = sadd.s32 %s29, %s2891
          %s2896 = smul.addr %s27, 32
          %s2897 = sadd.s32 %s2895, %s2896
          %s2898 = smul.addr %s2897, 64
          %s2899 = scalar_lea.hbm %s3, %s2898
          %s2900 = sshll.u32 %s2882, 4
          %s2901 = int_to_ptr.vmem [resolvable:$true] %s2900
          %2906 = dma.vmem_to_hbm [thread:$0]  %s2901, 2048, %s2899, %s2879, 64, 64, 4
        $region36: #{tpu_custom_call.1} parent=31 // pred_fallthru
          _
        // Predicated region
        $region37: #{tpu_custom_call.1} parent=31 // pred_check
          %p2907 = pneg %p175
        $region38: #{tpu_custom_call.1} parent=31 // pred_check_branch
          %2909 = sbr.rel (%p2907) target = $region40
        $region39: #{tpu_custom_call.1} parent=31 // pred_region
          %s2911 = ssub.s32 32, 32
          %2912 = vsyncadd %s2884, %s2911
          %s2913 = sadd.s32 %s29, %s28
          %s2914 = sadd.s32 %s2913, %s27
          %s2915 = smul.addr %s2914, 32
          %s2916 = scalar_lea.hbm %s4, %s2915
          %s2918 = sshll.u32 %s2887, 4
          %s2919 = int_to_ptr.vmem [resolvable:$true] %s2918
          %2921 = dma.vmem_to_hbm [thread:$0]  %s2919, 32, %s2916, %s2884
        $region40: #{tpu_custom_call.1} parent=31 // pred_fallthru
          _
      $region32: #{tpu_custom_call.1} parent=5 // pred_fallthru
        _
      %p2922 = scmp.le.s32.totalorder 2, %s17
      // Predicated region
      $region41: #{tpu_custom_call.1} parent=5 // pred_check
        %p2923 = pneg %p2922
      $region42: #{tpu_custom_call.1} parent=5 // pred_check_branch
        %2925 = sbr.rel (%p2923) target = $region44
      $region43: #{tpu_custom_call.1} parent=5 // pred_region
        %s2926 = ssub.s32 %s17, 2
        // Predicated region
        $region45: #{tpu_custom_call.1} parent=43 // pred_check
          %p2927 = pneg %p151
        $region46: #{tpu_custom_call.1} parent=43 // pred_check_branch
          %2929 = sbr.rel (%p2927) target = $region48
        $region47: #{tpu_custom_call.1} parent=43 // pred_region
          %s2930 = sand.u32 %s136, 1
          %s2931 = scalar_lea.sflag [#allocation3], %s2930
          %s2932 = sand.u32 %s136, 1
          %s2933 = smul.addr %s2932, 128
          %s2934 = scalar_lea.vmem [#allocation2], %s2933
          %2935 = dma.done %s2931, 2048
        $region48: #{tpu_custom_call.1} parent=43 // pred_fallthru
          _
        // Predicated region
        $region49: #{tpu_custom_call.1} parent=43 // pred_check
          %p2936 = pneg %p181
        $region50: #{tpu_custom_call.1} parent=43 // pred_check_branch
          %2938 = sbr.rel (%p2936) target = $region52
        $region51: #{tpu_custom_call.1} parent=43 // pred_region
          %s2939 = sand.u32 %s166, 1
          %s2940 = scalar_lea.sflag [#allocation5], %s2939
          %s2941 = sand.u32 %s166, 1
          %s2942 = smul.addr %s2941, 2
          %s2943 = scalar_lea.vmem [#allocation4], %s2942
          %2944 = dma.done %s2940, 32
        $region52: #{tpu_custom_call.1} parent=43 // pred_fallthru
          _
      $region44: #{tpu_custom_call.1} parent=5 // pred_fallthru
        _
    $region6: #{tpu_custom_call.1} parent=1 // loop_footer
      %s21 = sadd.s32 1, %s17
    $region7: #{tpu_custom_call.1} parent=1 // loop_footer_branch
      %16 = sbr.rel target = $region3
    $region8: #{tpu_custom_call.1} parent=1 // loop_exit
      _
    %2945 = vsyncpa [#allocation3], 1
    %s2946 = scalar_lea.sflag [#allocation3], 1
    %2947 = vsyncpa %s2946, 1
    %2948 = vsyncpa [#allocation5], 1
    %s2949 = scalar_lea.sflag [#allocation5], 1
    %2950 = vsyncpa %s2949, 1

</llo_original>
